<compile_context>
chip_gen: v6e
topology: v6e:2x2x1
jax: 0.10.0
libtpu: 0.0.40
codegen_flags: <defaults>
</compile_context>

<pallas_src>
import jax
import jax.numpy as jnp
from jax.experimental import pallas as pl
from jax.experimental.pallas import tpu as pltpu

# ----------------------------- config (cfg.RPN defaults of PointRCNN) --------
LOC_SCOPE = 3.0
LOC_BIN_SIZE = 0.5
NUM_HEAD_BIN = 12
LOC_XZ_FINE = True

PER_LOC_BIN_NUM = int(LOC_SCOPE / LOC_BIN_SIZE) * 2            # 12
if LOC_XZ_FINE:
    REG_CHANNEL = PER_LOC_BIN_NUM * 4 + NUM_HEAD_BIN * 2 + 3   # 75
else:
    REG_CHANNEL = PER_LOC_BIN_NUM * 2 + NUM_HEAD_BIN * 2 + 3
REG_CHANNEL += 1                                               # 76

FEAT_DIM = 160          # channels fed to the FC heads (Dense(160, ...))
P_REP = 120             # representative points (last AbbPointCNN has P=120)
IN_PAD = 8              # lane-padded input coordinate width (true 3)
BB_HID = 128            # lane-padded backbone hidden width (true 32/64/96)
HEAD_H1 = 256           # fused head hidden 1: [cls 128 | reg 128]
HEAD_OUT = 128          # fused head output lanes: [reg 0:76 | cls 76 | pad]
BIAS_ROWS = 8           # packed bias block rows (7 used + 1 pad)


# ----------------------------- kernel -----------------------------------------
def _elu(x):
    # exp(x)-1 vs expm1: ~1 ulp near 0; where() discards the positive branch,
    # so no min() clamp is needed (select never propagates the large exp).
    return jnp.where(x > 0.0, x, jnp.exp(x) - 1.0)


def _rpn_fused_kernel(x_ref,
                      w1, w2, w3, w4, wh1, wh2, wh3,
                      bias_ref,
                      feat_ref, head_ref):
    bf16 = jnp.bfloat16
    f32 = jnp.float32

    b = bias_ref[...]                                  # (8, 256) packed biases

    # ---- backbone stand-in: shared per-point MLP, lane-padded to 128 --------
    # TODO(synk): KNN neighbor gather + learned KxK X-transform of PointCNN
    # X-Conv is not implemented; only the per-point lifting matmuls are.
    h = jnp.dot(x_ref[...], w1[...], preferred_element_type=f32)      # (M, 128)
    h = _elu(h + b[0:1, :BB_HID])
    h = _elu(jnp.dot(h.astype(bf16), w2[...], preferred_element_type=f32)
             + b[1:2, :BB_HID])
    h = _elu(jnp.dot(h.astype(bf16), w3[...], preferred_element_type=f32)
             + b[2:3, :BB_HID])
    feat = _elu(jnp.dot(h.astype(bf16), w4[...], preferred_element_type=f32)
                + b[3:4, :FEAT_DIM])
    feat_ref[...] = feat                               # (M, 160) f32 out

    # ---- fused cls + reg FC heads (bias & eval-BN pre-folded into W/t) ------
    g = _elu(jnp.dot(feat.astype(bf16), wh1[...], preferred_element_type=f32)
             + b[4:5, :HEAD_H1])
    g = _elu(jnp.dot(g.astype(bf16), wh2[...], preferred_element_type=f32)
             + b[5:6, :HEAD_OUT])
    # TODO(synk): dropout(p=0.5) in the second Dense applied as identity (eval mode).
    head_ref[...] = (jnp.dot(g.astype(bf16), wh3[...], preferred_element_type=f32)
                     + b[6:7, :HEAD_OUT])


# ----------------------------- wrapper -----------------------------------------
def _choose_tile_m(m_total):
    # >= 2 parallel row tiles when small (both v7x TensorCores busy);
    # 256-row tiles once the workload is big enough to fill the 256-wide MXU.
    return 256 if m_total >= 512 else 128


def rpn_forward(pts_input, kernel_params):
    """pts_input: (B, N, 3) f32.  kernel_params: tuple from prepare_kernel_params."""
    B, N, _ = pts_input.shape
    assert N >= P_REP

    # TODO(synk): RandPointCNN uses random representative-point sampling; we
    # deterministically take the first P_REP points as representatives.
    backbone_xyz = pts_input[:, :P_REP, :]                          # (B, 120, 3)

    # Fold batch into M and pad: rows -> multiple of TILE_M, lanes 3 -> 8.
    m_total = B * P_REP
    tile_m = _choose_tile_m(m_total)
    m_pad = ((m_total + tile_m - 1) // tile_m) * tile_m
    num_tiles = m_pad // tile_m

    x_flat = backbone_xyz.reshape(m_total, 3)
    x_pad = jnp.zeros((m_pad, IN_PAD), jnp.float32).at[:m_total, :3].set(x_flat)

    weight_specs = [pl.BlockSpec(p.shape, lambda i: (0, 0)) for p in kernel_params]

    per_row_flops = 2 * (IN_PAD * BB_HID + 2 * BB_HID * BB_HID + BB_HID * FEAT_DIM
                         + FEAT_DIM * HEAD_H1 + HEAD_H1 * HEAD_OUT
                         + HEAD_OUT * HEAD_OUT)
    flops = m_pad * per_row_flops
    transcendentals = m_pad * (3 * BB_HID + FEAT_DIM + HEAD_H1 + HEAD_OUT)
    bytes_accessed = (int(x_pad.size) * 4
                      + sum(int(p.size) * p.dtype.itemsize for p in kernel_params)
                      + m_pad * (FEAT_DIM + HEAD_OUT) * 4)

    feat_pad, head_pad = pl.pallas_call(
        _rpn_fused_kernel,
        out_shape=(jax.ShapeDtypeStruct((m_pad, FEAT_DIM), jnp.float32),
                   jax.ShapeDtypeStruct((m_pad, HEAD_OUT), jnp.float32)),
        grid=(num_tiles,),
        in_specs=[pl.BlockSpec((tile_m, IN_PAD), lambda i: (i, 0))] + weight_specs,
        out_specs=(pl.BlockSpec((tile_m, FEAT_DIM), lambda i: (i, 0)),
                   pl.BlockSpec((tile_m, HEAD_OUT), lambda i: (i, 0))),
        compiler_params=pltpu.CompilerParams(dimension_semantics=("parallel",)),
        cost_estimate=pl.CostEstimate(flops=flops,
                                      transcendentals=transcendentals,
                                      bytes_accessed=bytes_accessed),
    )(x_pad, *kernel_params)

    feat = feat_pad[:m_total].reshape(B, P_REP, FEAT_DIM)           # (B, 120, 160)
    head = head_pad[:m_total].reshape(B, P_REP, HEAD_OUT)           # (B, 120, 128)
    rpn_reg = head[..., :REG_CHANNEL].transpose(0, 2, 1)            # (B, 76, 120)
    rpn_cls = head[..., REG_CHANNEL:REG_CHANNEL + 1].transpose(0, 2, 1)  # (B, 1, 120)

    return {
        "rpn_cls": rpn_cls,
        "rpn_reg": rpn_reg,
        "backbone_xyz": backbone_xyz,
        "backbone_features": feat,                                  # (B, 120, 160)
    }


# ----------------------------- parameter init (true widths) -------------------
def _init_linear(key, cin, cout, scale=0.1):
    kw, kb = jax.random.split(key)
    w = jax.random.normal(kw, (cin, cout), jnp.float32) * scale
    b = jax.random.normal(kb, (1, cout), jnp.float32) * 0.01
    return w, b


def _init_bn_folded(key, c, eps=1e-5):
    kg, kb, km, kv = jax.random.split(key, 4)
    gamma = 1.0 + 0.05 * jax.random.normal(kg, (1, c), jnp.float32)
    beta = 0.05 * jax.random.normal(kb, (1, c), jnp.float32)
    mean = 0.05 * jax.random.normal(km, (1, c), jnp.float32)
    var = 1.0 + 0.05 * jnp.abs(jax.random.normal(kv, (1, c), jnp.float32))
    scale = gamma / jnp.sqrt(var + eps)
    shift = beta - mean * scale
    return scale, shift


def init_backbone_params(key):
    dims = [(3, 32), (32, 64), (64, 96), (96, FEAT_DIM)]
    params = []
    for d in dims:
        key, sub = jax.random.split(key)
        params.extend(_init_linear(sub, *d))
    return tuple(params)


def init_head_params(key, out_dim):
    k1, k2, k3, kb1, kb2 = jax.random.split(key, 5)
    w1, b1 = _init_linear(k1, FEAT_DIM, 128)
    s1, t1 = _init_bn_folded(kb1, 128)
    w2, b2 = _init_linear(k2, 128, 64)
    s2, t2 = _init_bn_folded(kb2, 64)
    w3, b3 = _init_linear(k3, 64, out_dim)
    return (w1, b1, s1, t1, w2, b2, s2, t2, w3, b3)


# ----------------------------- parameter prep (pad / fold / fuse / bf16) ------
def prepare_kernel_params(backbone_params, cls_params, reg_params):
    bw1, bb1, bw2, bb2, bw3, bb3, bw4, bb4 = backbone_params

    def pad2(a, rows, cols):
        out = jnp.zeros((rows, cols), a.dtype)
        return out.at[: a.shape[0], : a.shape[1]].set(a)

    # Backbone: zero-pad hidden widths to 128 lanes (exactly equivalent math:
    # padded weight cols / biases are 0, ELU(0)=0, next layer's padded rows are 0).
    w1 = pad2(bw1, IN_PAD, BB_HID)     # true (3, 32)
    b1 = pad2(bb1, 1, BB_HID)
    w2 = pad2(bw2, BB_HID, BB_HID)     # true (32, 64)
    b2 = pad2(bb2, 1, BB_HID)
    w3 = pad2(bw3, BB_HID, BB_HID)     # true (64, 96)
    b3 = pad2(bb3, 1, BB_HID)
    w4 = pad2(bw4, BB_HID, FEAT_DIM)   # true (96, 160)
    b4 = bb4                           # (1, 160)

    def fold(w, b, s, t):
        # ELU(s * (x @ w + b) + t) == ELU(x @ (w * s) + (b * s + t))
        return w * s, b * s + t

    cw1, cb1, cs1, ct1, cw2, cb2, cs2, ct2, cw3, cb3 = cls_params
    rw1, rb1, rs1, rt1, rw2, rb2, rs2, rt2, rw3, rb3 = reg_params

    # Head layer 1: 160 -> 256  ==  [cls 128 | reg 128]
    cw1f, ct1f = fold(cw1, cb1, cs1, ct1)
    rw1f, rt1f = fold(rw1, rb1, rs1, rt1)
    wh1 = jnp.concatenate([cw1f, rw1f], axis=1)                       # (160, 256)
    th1 = jnp.concatenate([ct1f, rt1f], axis=1)                       # (1, 256)

    # Head layer 2: 256 -> 128 block-diagonal  ==  [cls 64 | reg 64]
    cw2f, ct2f = fold(cw2, cb2, cs2, ct2)                             # (128, 64)
    rw2f, rt2f = fold(rw2, rb2, rs2, rt2)                             # (128, 64)
    wh2 = jnp.zeros((HEAD_H1, HEAD_OUT), jnp.float32)
    wh2 = wh2.at[:128, :64].set(cw2f).at[128:, 64:].set(rw2f)
    th2 = jnp.concatenate([ct2f, rt2f], axis=1)                       # (1, 128)

    # Head layer 3 (no BN / activation): 128 -> 128  ==  [reg 0:76 | cls 76 | 0-pad]
    wh3 = jnp.zeros((HEAD_OUT, HEAD_OUT), jnp.float32)
    wh3 = wh3.at[64:, :REG_CHANNEL].set(rw3)                          # reg (64, 76)
    wh3 = wh3.at[:64, REG_CHANNEL:REG_CHANNEL + 1].set(cw3)           # cls (64, 1)
    bh3 = jnp.zeros((1, HEAD_OUT), jnp.float32)
    bh3 = bh3.at[:, :REG_CHANNEL].set(rb3)
    bh3 = bh3.at[:, REG_CHANNEL:REG_CHANNEL + 1].set(cb3)

    # Pack all 7 bias / folded-shift rows into one (8, 256) f32 block.
    bias = jnp.zeros((BIAS_ROWS, HEAD_H1), jnp.float32)
    bias = bias.at[0, :BB_HID].set(b1[0])
    bias = bias.at[1, :BB_HID].set(b2[0])
    bias = bias.at[2, :BB_HID].set(b3[0])
    bias = bias.at[3, :FEAT_DIM].set(b4[0])
    bias = bias.at[4, :HEAD_H1].set(th1[0])
    bias = bias.at[5, :HEAD_OUT].set(th2[0])
    bias = bias.at[6, :HEAD_OUT].set(bh3[0])

    bf = lambda a: a.astype(jnp.bfloat16)
    # w1 stays f32 (tiny K=8 first layer); all other matmul weights in bf16;
    # packed biases / folded-BN shifts stay f32.
    return (w1, bf(w2), bf(w3), bf(w4), bf(wh1), bf(wh2), bf(wh3), bias)


# ----------------------------- main -------------------------------------------
if __name__ == "__main__":
    key = jax.random.PRNGKey(0)
    k_pts, k_bb, k_cls, k_reg = jax.random.split(key, 4)

    B, N = 2, 256
    pts_input = jax.random.normal(k_pts, (B, N, 3), jnp.float32)

    backbone_params = init_backbone_params(k_bb)
    cls_params = init_head_params(k_cls, 1)             # true cls width = 1
    reg_params = init_head_params(k_reg, REG_CHANNEL)   # 76
    kernel_params = prepare_kernel_params(backbone_params, cls_params, reg_params)

    ret = jax.jit(rpn_forward)(pts_input, kernel_params)
    jax.block_until_ready(ret)

    assert ret["rpn_cls"].shape == (B, 1, P_REP)
    assert ret["rpn_reg"].shape == (B, REG_CHANNEL, P_REP)
    assert ret["backbone_features"].shape == (B, P_REP, FEAT_DIM)
    assert ret["backbone_xyz"].shape == (B, P_REP, 3)
    assert all(bool(jnp.all(jnp.isfinite(v))) for v in ret.values())

    print("KERNEL_OK")
</pallas_src>

<mosaic_0001>
module attributes {stable_mosaic.version = 11 : i64} {
  func.func @_rpn_fused_kernel(%arg0: i32, %arg1: memref<128x8xf32, #tpu.memory_space<vmem>>, %arg2: memref<8x128xf32, #tpu.memory_space<vmem>>, %arg3: memref<128x128xbf16, #tpu.memory_space<vmem>>, %arg4: memref<128x128xbf16, #tpu.memory_space<vmem>>, %arg5: memref<128x160xbf16, #tpu.memory_space<vmem>>, %arg6: memref<160x256xbf16, #tpu.memory_space<vmem>>, %arg7: memref<256x128xbf16, #tpu.memory_space<vmem>>, %arg8: memref<128x128xbf16, #tpu.memory_space<vmem>>, %arg9: memref<8x256xf32, #tpu.memory_space<vmem>>, %arg10: memref<128x160xf32, #tpu.memory_space<vmem>>, %arg11: memref<128x128xf32, #tpu.memory_space<vmem>>) attributes {dimension_semantics = [#tpu.dimension_semantics<parallel>], iteration_bounds = array<i64: 2>, scalar_prefetch = 0 : i64, scratch_operands = 0 : i64, tpu.core_type = #tpu.core_type<tc>, window_params = [{transform_indices = @transform_0, window_bounds = array<i64: 128, 8>}, {pipeline_mode = #tpu.pipeline_mode<synchronous>, transform_indices = @transform_1, window_bounds = array<i64: 8, 128>}, {pipeline_mode = #tpu.pipeline_mode<synchronous>, transform_indices = @transform_2, window_bounds = array<i64: 128, 128>}, {pipeline_mode = #tpu.pipeline_mode<synchronous>, transform_indices = @transform_3, window_bounds = array<i64: 128, 128>}, {pipeline_mode = #tpu.pipeline_mode<synchronous>, transform_indices = @transform_4, window_bounds = array<i64: 128, 160>}, {pipeline_mode = #tpu.pipeline_mode<synchronous>, transform_indices = @transform_5, window_bounds = array<i64: 160, 256>}, {pipeline_mode = #tpu.pipeline_mode<synchronous>, transform_indices = @transform_6, window_bounds = array<i64: 256, 128>}, {pipeline_mode = #tpu.pipeline_mode<synchronous>, transform_indices = @transform_7, window_bounds = array<i64: 128, 128>}, {pipeline_mode = #tpu.pipeline_mode<synchronous>, transform_indices = @transform_8, window_bounds = array<i64: 8, 256>}, {transform_indices = @transform_9, window_bounds = array<i64: 128, 160>}, {transform_indices = @transform_10, window_bounds = array<i64: 128, 128>}]} {
    %c0 = arith.constant 0 : index
    %c0_0 = arith.constant 0 : index
    %0 = vector.load %arg9[%c0, %c0_0] : memref<8x256xf32, #tpu.memory_space<vmem>>, vector<8x256xf32>
    %c0_1 = arith.constant 0 : index
    %c0_2 = arith.constant 0 : index
    %1 = vector.load %arg1[%c0_1, %c0_2] : memref<128x8xf32, #tpu.memory_space<vmem>>, vector<128x8xf32>
    %c0_3 = arith.constant 0 : index
    %c0_4 = arith.constant 0 : index
    %2 = vector.load %arg2[%c0_3, %c0_4] : memref<8x128xf32, #tpu.memory_space<vmem>>, vector<8x128xf32>
    %cst = arith.constant dense<0.000000e+00> : vector<128x128xf32>
    %3 = tpu.matmul %1, %2, %cst {dimension_numbers = #tpu.dot_dimension_numbers<[1], [0], [0], [1], [0, 0, 1, 1], [], []>} : vector<128x8xf32>, vector<8x128xf32>, vector<128x128xf32> -> vector<128x128xf32>
    %4 = vector.extract_strided_slice %0 {offsets = [0, 0], sizes = [1, 128], strides = [1, 1]} : vector<8x256xf32> to vector<1x128xf32>
    %5 = vector.broadcast %4 : vector<1x128xf32> to vector<128x128xf32>
    %6 = arith.addf %3, %5 : vector<128x128xf32>
    %cst_5 = arith.constant 0.000000e+00 : f32
    %7 = vector.broadcast %cst_5 : f32 to vector<128x128xf32>
    %8 = arith.cmpf ogt, %6, %7 : vector<128x128xf32>
    %9 = math.exp %6 : vector<128x128xf32>
    %cst_6 = arith.constant 1.000000e+00 : f32
    %10 = vector.broadcast %cst_6 : f32 to vector<128x128xf32>
    %11 = arith.subf %9, %10 : vector<128x128xf32>
    %12 = arith.select %8, %6, %11 : vector<128x128xi1>, vector<128x128xf32>
    %13 = arith.truncf %12 : vector<128x128xf32> to vector<128x128xbf16>
    %c0_7 = arith.constant 0 : index
    %c0_8 = arith.constant 0 : index
    %14 = vector.load %arg3[%c0_7, %c0_8] : memref<128x128xbf16, #tpu.memory_space<vmem>>, vector<128x128xbf16>
    %cst_9 = arith.constant dense<0.000000e+00> : vector<128x128xf32>
    %15 = tpu.matmul %13, %14, %cst_9 {dimension_numbers = #tpu.dot_dimension_numbers<[1], [0], [0], [1], [0, 0, 1, 1], [], []>} : vector<128x128xbf16>, vector<128x128xbf16>, vector<128x128xf32> -> vector<128x128xf32>
    %16 = vector.extract_strided_slice %0 {offsets = [1, 0], sizes = [1, 128], strides = [1, 1]} : vector<8x256xf32> to vector<1x128xf32>
    %17 = vector.broadcast %16 : vector<1x128xf32> to vector<128x128xf32>
    %18 = arith.addf %15, %17 : vector<128x128xf32>
    %cst_10 = arith.constant 0.000000e+00 : f32
    %19 = vector.broadcast %cst_10 : f32 to vector<128x128xf32>
    %20 = arith.cmpf ogt, %18, %19 : vector<128x128xf32>
    %21 = math.exp %18 : vector<128x128xf32>
    %cst_11 = arith.constant 1.000000e+00 : f32
    %22 = vector.broadcast %cst_11 : f32 to vector<128x128xf32>
    %23 = arith.subf %21, %22 : vector<128x128xf32>
    %24 = arith.select %20, %18, %23 : vector<128x128xi1>, vector<128x128xf32>
    %25 = arith.truncf %24 : vector<128x128xf32> to vector<128x128xbf16>
    %c0_12 = arith.constant 0 : index
    %c0_13 = arith.constant 0 : index
    %26 = vector.load %arg4[%c0_12, %c0_13] : memref<128x128xbf16, #tpu.memory_space<vmem>>, vector<128x128xbf16>
    %cst_14 = arith.constant dense<0.000000e+00> : vector<128x128xf32>
    %27 = tpu.matmul %25, %26, %cst_14 {dimension_numbers = #tpu.dot_dimension_numbers<[1], [0], [0], [1], [0, 0, 1, 1], [], []>} : vector<128x128xbf16>, vector<128x128xbf16>, vector<128x128xf32> -> vector<128x128xf32>
    %28 = vector.extract_strided_slice %0 {offsets = [2, 0], sizes = [1, 128], strides = [1, 1]} : vector<8x256xf32> to vector<1x128xf32>
    %29 = vector.broadcast %28 : vector<1x128xf32> to vector<128x128xf32>
    %30 = arith.addf %27, %29 : vector<128x128xf32>
    %cst_15 = arith.constant 0.000000e+00 : f32
    %31 = vector.broadcast %cst_15 : f32 to vector<128x128xf32>
    %32 = arith.cmpf ogt, %30, %31 : vector<128x128xf32>
    %33 = math.exp %30 : vector<128x128xf32>
    %cst_16 = arith.constant 1.000000e+00 : f32
    %34 = vector.broadcast %cst_16 : f32 to vector<128x128xf32>
    %35 = arith.subf %33, %34 : vector<128x128xf32>
    %36 = arith.select %32, %30, %35 : vector<128x128xi1>, vector<128x128xf32>
    %37 = arith.truncf %36 : vector<128x128xf32> to vector<128x128xbf16>
    %c0_17 = arith.constant 0 : index
    %c0_18 = arith.constant 0 : index
    %38 = vector.load %arg5[%c0_17, %c0_18] : memref<128x160xbf16, #tpu.memory_space<vmem>>, vector<128x160xbf16>
    %cst_19 = arith.constant dense<0.000000e+00> : vector<128x160xf32>
    %39 = tpu.matmul %37, %38, %cst_19 {dimension_numbers = #tpu.dot_dimension_numbers<[1], [0], [0], [1], [0, 0, 1, 1], [], []>} : vector<128x128xbf16>, vector<128x160xbf16>, vector<128x160xf32> -> vector<128x160xf32>
    %40 = vector.extract_strided_slice %0 {offsets = [3, 0], sizes = [1, 160], strides = [1, 1]} : vector<8x256xf32> to vector<1x160xf32>
    %41 = vector.broadcast %40 : vector<1x160xf32> to vector<128x160xf32>
    %42 = arith.addf %39, %41 : vector<128x160xf32>
    %cst_20 = arith.constant 0.000000e+00 : f32
    %43 = vector.broadcast %cst_20 : f32 to vector<128x160xf32>
    %44 = arith.cmpf ogt, %42, %43 : vector<128x160xf32>
    %45 = math.exp %42 : vector<128x160xf32>
    %cst_21 = arith.constant 1.000000e+00 : f32
    %46 = vector.broadcast %cst_21 : f32 to vector<128x160xf32>
    %47 = arith.subf %45, %46 : vector<128x160xf32>
    %48 = arith.select %44, %42, %47 : vector<128x160xi1>, vector<128x160xf32>
    %c0_22 = arith.constant 0 : index
    %c0_23 = arith.constant 0 : index
    %49 = vector.load %arg10[%c0_22, %c0_23] : memref<128x160xf32, #tpu.memory_space<vmem>>, vector<128x160xf32>
    tpu.vector_store %arg10[%c0_22, %c0_23], %48 {strides = array<i32>} : memref<128x160xf32, #tpu.memory_space<vmem>>, vector<128x160xf32>,
    %50 = arith.truncf %48 : vector<128x160xf32> to vector<128x160xbf16>
    %c0_24 = arith.constant 0 : index
    %c0_25 = arith.constant 0 : index
    %51 = vector.load %arg6[%c0_24, %c0_25] : memref<160x256xbf16, #tpu.memory_space<vmem>>, vector<160x256xbf16>
    %cst_26 = arith.constant dense<0.000000e+00> : vector<128x256xf32>
    %52 = tpu.matmul %50, %51, %cst_26 {dimension_numbers = #tpu.dot_dimension_numbers<[1], [0], [0], [1], [0, 0, 1, 1], [], []>} : vector<128x160xbf16>, vector<160x256xbf16>, vector<128x256xf32> -> vector<128x256xf32>
    %53 = vector.extract_strided_slice %0 {offsets = [4, 0], sizes = [1, 256], strides = [1, 1]} : vector<8x256xf32> to vector<1x256xf32>
    %54 = vector.broadcast %53 : vector<1x256xf32> to vector<128x256xf32>
    %55 = arith.addf %52, %54 : vector<128x256xf32>
    %cst_27 = arith.constant 0.000000e+00 : f32
    %56 = vector.broadcast %cst_27 : f32 to vector<128x256xf32>
    %57 = arith.cmpf ogt, %55, %56 : vector<128x256xf32>
    %58 = math.exp %55 : vector<128x256xf32>
    %cst_28 = arith.constant 1.000000e+00 : f32
    %59 = vector.broadcast %cst_28 : f32 to vector<128x256xf32>
    %60 = arith.subf %58, %59 : vector<128x256xf32>
    %61 = arith.select %57, %55, %60 : vector<128x256xi1>, vector<128x256xf32>
    %62 = arith.truncf %61 : vector<128x256xf32> to vector<128x256xbf16>
    %c0_29 = arith.constant 0 : index
    %c0_30 = arith.constant 0 : index
    %63 = vector.load %arg7[%c0_29, %c0_30] : memref<256x128xbf16, #tpu.memory_space<vmem>>, vector<256x128xbf16>
    %cst_31 = arith.constant dense<0.000000e+00> : vector<128x128xf32>
    %64 = tpu.matmul %62, %63, %cst_31 {dimension_numbers = #tpu.dot_dimension_numbers<[1], [0], [0], [1], [0, 0, 1, 1], [], []>} : vector<128x256xbf16>, vector<256x128xbf16>, vector<128x128xf32> -> vector<128x128xf32>
    %65 = vector.extract_strided_slice %0 {offsets = [5, 0], sizes = [1, 128], strides = [1, 1]} : vector<8x256xf32> to vector<1x128xf32>
    %66 = vector.broadcast %65 : vector<1x128xf32> to vector<128x128xf32>
    %67 = arith.addf %64, %66 : vector<128x128xf32>
    %cst_32 = arith.constant 0.000000e+00 : f32
    %68 = vector.broadcast %cst_32 : f32 to vector<128x128xf32>
    %69 = arith.cmpf ogt, %67, %68 : vector<128x128xf32>
    %70 = math.exp %67 : vector<128x128xf32>
    %cst_33 = arith.constant 1.000000e+00 : f32
    %71 = vector.broadcast %cst_33 : f32 to vector<128x128xf32>
    %72 = arith.subf %70, %71 : vector<128x128xf32>
    %73 = arith.select %69, %67, %72 : vector<128x128xi1>, vector<128x128xf32>
    %74 = arith.truncf %73 : vector<128x128xf32> to vector<128x128xbf16>
    %c0_34 = arith.constant 0 : index
    %c0_35 = arith.constant 0 : index
    %75 = vector.load %arg8[%c0_34, %c0_35] : memref<128x128xbf16, #tpu.memory_space<vmem>>, vector<128x128xbf16>
    %cst_36 = arith.constant dense<0.000000e+00> : vector<128x128xf32>
    %76 = tpu.matmul %74, %75, %cst_36 {dimension_numbers = #tpu.dot_dimension_numbers<[1], [0], [0], [1], [0, 0, 1, 1], [], []>} : vector<128x128xbf16>, vector<128x128xbf16>, vector<128x128xf32> -> vector<128x128xf32>
    %77 = vector.extract_strided_slice %0 {offsets = [6, 0], sizes = [1, 128], strides = [1, 1]} : vector<8x256xf32> to vector<1x128xf32>
    %78 = vector.broadcast %77 : vector<1x128xf32> to vector<128x128xf32>
    %79 = arith.addf %76, %78 : vector<128x128xf32>
    %c0_37 = arith.constant 0 : index
    %c0_38 = arith.constant 0 : index
    %80 = vector.load %arg11[%c0_37, %c0_38] : memref<128x128xf32, #tpu.memory_space<vmem>>, vector<128x128xf32>
    tpu.vector_store %arg11[%c0_37, %c0_38], %79 {strides = array<i32>} : memref<128x128xf32, #tpu.memory_space<vmem>>, vector<128x128xf32>,
    return
  }
  func.func @transform_0(%arg0: i32) -> (i32, i32) {
    %c0_i32 = arith.constant 0 : i32
    %c0_i32_0 = arith.constant 0 : i32
    return %arg0, %c0_i32 : i32, i32
  }
  func.func @transform_1(%arg0: i32) -> (i32, i32) {
    %c0_i32 = arith.constant 0 : i32
    %c0_i32_0 = arith.constant 0 : i32
    %c0_i32_1 = arith.constant 0 : i32
    return %c0_i32, %c0_i32_0 : i32, i32
  }
  func.func @transform_2(%arg0: i32) -> (i32, i32) {
    %c0_i32 = arith.constant 0 : i32
    %c0_i32_0 = arith.constant 0 : i32
    %c0_i32_1 = arith.constant 0 : i32
    return %c0_i32, %c0_i32_0 : i32, i32
  }
  func.func @transform_3(%arg0: i32) -> (i32, i32) {
    %c0_i32 = arith.constant 0 : i32
    %c0_i32_0 = arith.constant 0 : i32
    %c0_i32_1 = arith.constant 0 : i32
    return %c0_i32, %c0_i32_0 : i32, i32
  }
  func.func @transform_4(%arg0: i32) -> (i32, i32) {
    %c0_i32 = arith.constant 0 : i32
    %c0_i32_0 = arith.constant 0 : i32
    %c0_i32_1 = arith.constant 0 : i32
    return %c0_i32, %c0_i32_0 : i32, i32
  }
  func.func @transform_5(%arg0: i32) -> (i32, i32) {
    %c0_i32 = arith.constant 0 : i32
    %c0_i32_0 = arith.constant 0 : i32
    %c0_i32_1 = arith.constant 0 : i32
    return %c0_i32, %c0_i32_0 : i32, i32
  }
  func.func @transform_6(%arg0: i32) -> (i32, i32) {
    %c0_i32 = arith.constant 0 : i32
    %c0_i32_0 = arith.constant 0 : i32
    %c0_i32_1 = arith.constant 0 : i32
    return %c0_i32, %c0_i32_0 : i32, i32
  }
  func.func @transform_7(%arg0: i32) -> (i32, i32) {
    %c0_i32 = arith.constant 0 : i32
    %c0_i32_0 = arith.constant 0 : i32
    %c0_i32_1 = arith.constant 0 : i32
    return %c0_i32, %c0_i32_0 : i32, i32
  }
  func.func @transform_8(%arg0: i32) -> (i32, i32) {
    %c0_i32 = arith.constant 0 : i32
    %c0_i32_0 = arith.constant 0 : i32
    %c0_i32_1 = arith.constant 0 : i32
    return %c0_i32, %c0_i32_0 : i32, i32
  }
  func.func @transform_9(%arg0: i32) -> (i32, i32) {
    %c0_i32 = arith.constant 0 : i32
    %c0_i32_0 = arith.constant 0 : i32
    return %arg0, %c0_i32 : i32, i32
  }
  func.func @transform_10(%arg0: i32) -> (i32, i32) {
    %c0_i32 = arith.constant 0 : i32
    %c0_i32_0 = arith.constant 0 : i32
    return %arg0, %c0_i32 : i32, i32
  }
}

</mosaic_0001>

<llo_original>
// kernel: rpn_forward.1
$region0: #{rpn_forward.1}
  #allocation0 [shape = 'u32[]', space=smem, size = 0x4, offset = 0x4, fixed_abs, tag = 'smem constant byte address 0x4 - core index']
  #allocation1 [shape = 'u32[144,128]{1,0:T(1,128)}', space=vmem, size = 0x12000, scoped, tag = 'internal scratch']
  %s0 = inlined_call_operand.vmem [shape: f32[256,8], index: 0, kind: input, shape index: {}]
  %s1 = inlined_call_operand.vmem [shape: f32[8,128], index: 1, kind: input, shape index: {}]
  %s2 = inlined_call_operand.vmem [shape: bf16[128,128], index: 2, kind: input, shape index: {}]
  %s3 = inlined_call_operand.vmem [shape: bf16[128,128], index: 3, kind: input, shape index: {}]
  %s4 = inlined_call_operand.vmem [shape: bf16[128,160], index: 4, kind: input, shape index: {}]
  %s5 = inlined_call_operand.vmem [shape: bf16[160,256], index: 5, kind: input, shape index: {}]
  %s6 = inlined_call_operand.vmem [shape: bf16[256,128], index: 6, kind: input, shape index: {}]
  %s7 = inlined_call_operand.vmem [shape: bf16[128,128], index: 7, kind: input, shape index: {}]
  %s8 = inlined_call_operand.vmem [shape: f32[8,256], index: 8, kind: input, shape index: {}]
  %s9 = inlined_call_operand.vmem [shape: f32[256,160], index: 9, kind: output, shape index: {0}]
  %s10 = inlined_call_operand.vmem [shape: f32[256,128], index: 10, kind: output, shape index: {1}]
  %11 = xla_tuple %s9, %s10
  %s12 = sld [smem:[#allocation0]]
  $region77: #{rpn_forward.1} parent=0
    _
  %s14 = ssub.s32 1, %s12
  %s15 = scalar_select 0, %s14, %s12
  loop: start=0, step=1, limit=4
  $region2: #{rpn_forward.1} parent=0 // loop_pre_header
    _
  $region3: #{rpn_forward.1} parent=0 // loop_header
    %s17 = sphi 0, %s21
    %p18 = scmp.ge.s32.totalorder %s17, 4
    %s27 = sphi 0, %s29
    %s30 = sphi 0, %s27
    %s31 = sphi 0, %s30
    %s47 = sphi 0, %s31
    %s51 = sphi 0, %s51
    %s53 = sphi 0, %s51
    %s54 = sphi 0, %s53
    %s68 = sphi 0, %s54
    %s72 = sphi 0, %s72
    %s74 = sphi 0, %s72
    %s75 = sphi 0, %s74
    %s89 = sphi 0, %s75
    %s93 = sphi 0, %s93
    %s95 = sphi 0, %s93
    %s96 = sphi 0, %s95
    %s110 = sphi 0, %s96
    %s114 = sphi 0, %s114
    %s116 = sphi 0, %s114
    %s117 = sphi 0, %s116
    %s131 = sphi 0, %s117
    %s135 = sphi 0, %s135
    %s137 = sphi 0, %s135
    %s138 = sphi 0, %s137
    %s152 = sphi 0, %s138
    %s156 = sphi 0, %s156
    %s158 = sphi 0, %s156
    %s159 = sphi 0, %s158
    %s173 = sphi 0, %s159
    %s177 = sphi 0, %s177
    %s179 = sphi 0, %s177
    %s180 = sphi 0, %s179
    %s194 = sphi 0, %s180
    %s198 = sphi 0, %s198
    %s200 = sphi 0, %s198
    %s201 = sphi 0, %s200
    %s215 = sphi 0, %s201
    %s221 = sphi 0, %s223
    %s224 = sphi 0, %s221
    %s225 = sphi 0, %s224
    %s241 = sphi 0, %s225
    %s247 = sphi 0, %s249
    %s250 = sphi 0, %s247
    %s251 = sphi 0, %s250
    %s267 = sphi 0, %s251
  $region4: #{rpn_forward.1} parent=0 // loop_header_branch
    %20 = sbr.rel (%p18) target = $region8
  $region5: #{rpn_forward.1} parent=0 // loop_body
    %s22 = ssub.s32 %s17, 1
    %s23 = ssub.s32 %s17, 2
    %s24 = sadd.s32 %s17, 1
    %s25 = ssub.s32 %s17, %s24
    %p26 = scmp.eq.s32.totalorder %s25, 0
    %s28 = sadd.s32 %s27, 1
    %s29 = scalar_select %p26, %s27, %s28
    %p32 = pneg %p26
    %p33 = scmp.eq.s32.totalorder %s17, 1
    %p34 = por %p32, %p33
    %p35 = scmp.ne.s32.totalorder %s27, %s30
    %p36 = scmp.eq.s32.totalorder %s17, 0
    %p37 = por %p35, %p36
    %p38 = scmp.ne.s32.totalorder %s27, %s30
    %p39 = scmp.eq.s32.totalorder %s22, 1
    %p40 = por %p38, %p39
    %p41 = scmp.ne.s32.totalorder %s30, %s31
    %p42 = scmp.eq.s32.totalorder %s22, 0
    %p43 = por %p41, %p42
    %p44 = scmp.ne.s32.totalorder %s30, %s31
    %p45 = scmp.eq.s32.totalorder %s23, 1
    %p46 = por %p44, %p45
    %p48 = scmp.ne.s32.totalorder %s31, %s47
    %p49 = scmp.eq.s32.totalorder %s23, 0
    %p50 = por %p48, %p49
    %s52 = sadd.s32 %s51, 1
    %p55 = scmp.eq.s32.totalorder %s17, 1
    %p56 = scmp.ne.s32.totalorder %s51, %s53
    %p57 = scmp.eq.s32.totalorder %s17, 0
    %p58 = por %p56, %p57
    %p59 = scmp.ne.s32.totalorder %s51, %s53
    %p60 = scmp.eq.s32.totalorder %s22, 1
    %p61 = por %p59, %p60
    %p62 = scmp.ne.s32.totalorder %s53, %s54
    %p63 = scmp.eq.s32.totalorder %s22, 0
    %p64 = por %p62, %p63
    %p65 = scmp.ne.s32.totalorder %s53, %s54
    %p66 = scmp.eq.s32.totalorder %s23, 1
    %p67 = por %p65, %p66
    %p69 = scmp.ne.s32.totalorder %s54, %s68
    %p70 = scmp.eq.s32.totalorder %s23, 0
    %p71 = por %p69, %p70
    %s73 = sadd.s32 %s72, 1
    %p76 = scmp.eq.s32.totalorder %s17, 1
    %p77 = scmp.ne.s32.totalorder %s72, %s74
    %p78 = scmp.eq.s32.totalorder %s17, 0
    %p79 = por %p77, %p78
    %p80 = scmp.ne.s32.totalorder %s72, %s74
    %p81 = scmp.eq.s32.totalorder %s22, 1
    %p82 = por %p80, %p81
    %p83 = scmp.ne.s32.totalorder %s74, %s75
    %p84 = scmp.eq.s32.totalorder %s22, 0
    %p85 = por %p83, %p84
    %p86 = scmp.ne.s32.totalorder %s74, %s75
    %p87 = scmp.eq.s32.totalorder %s23, 1
    %p88 = por %p86, %p87
    %p90 = scmp.ne.s32.totalorder %s75, %s89
    %p91 = scmp.eq.s32.totalorder %s23, 0
    %p92 = por %p90, %p91
    %s94 = sadd.s32 %s93, 1
    %p97 = scmp.eq.s32.totalorder %s17, 1
    %p98 = scmp.ne.s32.totalorder %s93, %s95
    %p99 = scmp.eq.s32.totalorder %s17, 0
    %p100 = por %p98, %p99
    %p101 = scmp.ne.s32.totalorder %s93, %s95
    %p102 = scmp.eq.s32.totalorder %s22, 1
    %p103 = por %p101, %p102
    %p104 = scmp.ne.s32.totalorder %s95, %s96
    %p105 = scmp.eq.s32.totalorder %s22, 0
    %p106 = por %p104, %p105
    %p107 = scmp.ne.s32.totalorder %s95, %s96
    %p108 = scmp.eq.s32.totalorder %s23, 1
    %p109 = por %p107, %p108
    %p111 = scmp.ne.s32.totalorder %s96, %s110
    %p112 = scmp.eq.s32.totalorder %s23, 0
    %p113 = por %p111, %p112
    %s115 = sadd.s32 %s114, 1
    %p118 = scmp.eq.s32.totalorder %s17, 1
    %p119 = scmp.ne.s32.totalorder %s114, %s116
    %p120 = scmp.eq.s32.totalorder %s17, 0
    %p121 = por %p119, %p120
    %p122 = scmp.ne.s32.totalorder %s114, %s116
    %p123 = scmp.eq.s32.totalorder %s22, 1
    %p124 = por %p122, %p123
    %p125 = scmp.ne.s32.totalorder %s116, %s117
    %p126 = scmp.eq.s32.totalorder %s22, 0
    %p127 = por %p125, %p126
    %p128 = scmp.ne.s32.totalorder %s116, %s117
    %p129 = scmp.eq.s32.totalorder %s23, 1
    %p130 = por %p128, %p129
    %p132 = scmp.ne.s32.totalorder %s117, %s131
    %p133 = scmp.eq.s32.totalorder %s23, 0
    %p134 = por %p132, %p133
    %s136 = sadd.s32 %s135, 1
    %p139 = scmp.eq.s32.totalorder %s17, 1
    %p140 = scmp.ne.s32.totalorder %s135, %s137
    %p141 = scmp.eq.s32.totalorder %s17, 0
    %p142 = por %p140, %p141
    %p143 = scmp.ne.s32.totalorder %s135, %s137
    %p144 = scmp.eq.s32.totalorder %s22, 1
    %p145 = por %p143, %p144
    %p146 = scmp.ne.s32.totalorder %s137, %s138
    %p147 = scmp.eq.s32.totalorder %s22, 0
    %p148 = por %p146, %p147
    %p149 = scmp.ne.s32.totalorder %s137, %s138
    %p150 = scmp.eq.s32.totalorder %s23, 1
    %p151 = por %p149, %p150
    %p153 = scmp.ne.s32.totalorder %s138, %s152
    %p154 = scmp.eq.s32.totalorder %s23, 0
    %p155 = por %p153, %p154
    %s157 = sadd.s32 %s156, 1
    %p160 = scmp.eq.s32.totalorder %s17, 1
    %p161 = scmp.ne.s32.totalorder %s156, %s158
    %p162 = scmp.eq.s32.totalorder %s17, 0
    %p163 = por %p161, %p162
    %p164 = scmp.ne.s32.totalorder %s156, %s158
    %p165 = scmp.eq.s32.totalorder %s22, 1
    %p166 = por %p164, %p165
    %p167 = scmp.ne.s32.totalorder %s158, %s159
    %p168 = scmp.eq.s32.totalorder %s22, 0
    %p169 = por %p167, %p168
    %p170 = scmp.ne.s32.totalorder %s158, %s159
    %p171 = scmp.eq.s32.totalorder %s23, 1
    %p172 = por %p170, %p171
    %p174 = scmp.ne.s32.totalorder %s159, %s173
    %p175 = scmp.eq.s32.totalorder %s23, 0
    %p176 = por %p174, %p175
    %s178 = sadd.s32 %s177, 1
    %p181 = scmp.eq.s32.totalorder %s17, 1
    %p182 = scmp.ne.s32.totalorder %s177, %s179
    %p183 = scmp.eq.s32.totalorder %s17, 0
    %p184 = por %p182, %p183
    %p185 = scmp.ne.s32.totalorder %s177, %s179
    %p186 = scmp.eq.s32.totalorder %s22, 1
    %p187 = por %p185, %p186
    %p188 = scmp.ne.s32.totalorder %s179, %s180
    %p189 = scmp.eq.s32.totalorder %s22, 0
    %p190 = por %p188, %p189
    %p191 = scmp.ne.s32.totalorder %s179, %s180
    %p192 = scmp.eq.s32.totalorder %s23, 1
    %p193 = por %p191, %p192
    %p195 = scmp.ne.s32.totalorder %s180, %s194
    %p196 = scmp.eq.s32.totalorder %s23, 0
    %p197 = por %p195, %p196
    %s199 = sadd.s32 %s198, 1
    %p202 = scmp.eq.s32.totalorder %s17, 1
    %p203 = scmp.ne.s32.totalorder %s198, %s200
    %p204 = scmp.eq.s32.totalorder %s17, 0
    %p205 = por %p203, %p204
    %p206 = scmp.ne.s32.totalorder %s198, %s200
    %p207 = scmp.eq.s32.totalorder %s22, 1
    %p208 = por %p206, %p207
    %p209 = scmp.ne.s32.totalorder %s200, %s201
    %p210 = scmp.eq.s32.totalorder %s22, 0
    %p211 = por %p209, %p210
    %p212 = scmp.ne.s32.totalorder %s200, %s201
    %p213 = scmp.eq.s32.totalorder %s23, 1
    %p214 = por %p212, %p213
    %p216 = scmp.ne.s32.totalorder %s201, %s215
    %p217 = scmp.eq.s32.totalorder %s23, 0
    %p218 = por %p216, %p217
    %s219 = ssub.s32 %s17, %s24
    %p220 = scmp.eq.s32.totalorder %s219, 0
    %s222 = sadd.s32 %s221, 1
    %s223 = scalar_select %p220, %s221, %s222
    %p226 = pneg %p220
    %p227 = scmp.eq.s32.totalorder %s17, 1
    %p228 = por %p226, %p227
    %p229 = scmp.ne.s32.totalorder %s221, %s224
    %p230 = scmp.eq.s32.totalorder %s17, 0
    %p231 = por %p229, %p230
    %p232 = scmp.ne.s32.totalorder %s221, %s224
    %p233 = scmp.eq.s32.totalorder %s22, 1
    %p234 = por %p232, %p233
    %p235 = scmp.ne.s32.totalorder %s224, %s225
    %p236 = scmp.eq.s32.totalorder %s22, 0
    %p237 = por %p235, %p236
    %p238 = scmp.ne.s32.totalorder %s224, %s225
    %p239 = scmp.eq.s32.totalorder %s23, 1
    %p240 = por %p238, %p239
    %p242 = scmp.ne.s32.totalorder %s225, %s241
    %p243 = scmp.eq.s32.totalorder %s23, 0
    %p244 = por %p242, %p243
    %s245 = ssub.s32 %s17, %s24
    %p246 = scmp.eq.s32.totalorder %s245, 0
    %s248 = sadd.s32 %s247, 1
    %s249 = scalar_select %p246, %s247, %s248
    %p252 = pneg %p246
    %p253 = scmp.eq.s32.totalorder %s17, 1
    %p254 = por %p252, %p253
    %p255 = scmp.ne.s32.totalorder %s247, %s250
    %p256 = scmp.eq.s32.totalorder %s17, 0
    %p257 = por %p255, %p256
    %p258 = scmp.ne.s32.totalorder %s247, %s250
    %p259 = scmp.eq.s32.totalorder %s22, 1
    %p260 = por %p258, %p259
    %p261 = scmp.ne.s32.totalorder %s250, %s251
    %p262 = scmp.eq.s32.totalorder %s22, 0
    %p263 = por %p261, %p262
    %p264 = scmp.ne.s32.totalorder %s250, %s251
    %p265 = scmp.eq.s32.totalorder %s23, 1
    %p266 = por %p264, %p265
    %p268 = scmp.ne.s32.totalorder %s251, %s267
    %p269 = scmp.eq.s32.totalorder %s23, 0
    %p270 = por %p268, %p269
    %p271 = scmp.le.s32.totalorder 1, %s17
    %p272 = scmp.lt.s32.totalorder %s17, 3
    %p273 = pnand %p271, %p272
    %p274 = pneg %p273
    // Predicated region
    $region9: #{rpn_forward.1} parent=5 // pred_check
      _
    $region10: #{rpn_forward.1} parent=5 // pred_check_branch
      %276 = sbr.rel (%p273) target = $region12
    $region11: #{rpn_forward.1} parent=5 // pred_region
      %s277 = ssub.s32 %s17, 1
      // Predicated region
      $region13: #{rpn_forward.1} parent=11 // pred_check
        %p278 = pneg %p64
      $region14: #{rpn_forward.1} parent=11 // pred_check_branch
        %280 = sbr.rel (%p278) target = $region16
      $region15: #{rpn_forward.1} parent=11 // pred_region
        _
      $region16: #{rpn_forward.1} parent=11 // pred_fallthru
        _
      // Predicated region
      $region17: #{rpn_forward.1} parent=11 // pred_check
        %p281 = pneg %p85
      $region18: #{rpn_forward.1} parent=11 // pred_check_branch
        %283 = sbr.rel (%p281) target = $region20
      $region19: #{rpn_forward.1} parent=11 // pred_region
        _
      $region20: #{rpn_forward.1} parent=11 // pred_fallthru
        _
      // Predicated region
      $region21: #{rpn_forward.1} parent=11 // pred_check
        %p284 = pneg %p106
      $region22: #{rpn_forward.1} parent=11 // pred_check_branch
        %286 = sbr.rel (%p284) target = $region24
      $region23: #{rpn_forward.1} parent=11 // pred_region
        _
      $region24: #{rpn_forward.1} parent=11 // pred_fallthru
        _
      // Predicated region
      $region25: #{rpn_forward.1} parent=11 // pred_check
        %p287 = pneg %p127
      $region26: #{rpn_forward.1} parent=11 // pred_check_branch
        %289 = sbr.rel (%p287) target = $region28
      $region27: #{rpn_forward.1} parent=11 // pred_region
        _
      $region28: #{rpn_forward.1} parent=11 // pred_fallthru
        _
      // Predicated region
      $region29: #{rpn_forward.1} parent=11 // pred_check
        %p290 = pneg %p148
      $region30: #{rpn_forward.1} parent=11 // pred_check_branch
        %292 = sbr.rel (%p290) target = $region32
      $region31: #{rpn_forward.1} parent=11 // pred_region
        _
      $region32: #{rpn_forward.1} parent=11 // pred_fallthru
        _
      // Predicated region
      $region33: #{rpn_forward.1} parent=11 // pred_check
        %p293 = pneg %p169
      $region34: #{rpn_forward.1} parent=11 // pred_check_branch
        %295 = sbr.rel (%p293) target = $region36
      $region35: #{rpn_forward.1} parent=11 // pred_region
        _
      $region36: #{rpn_forward.1} parent=11 // pred_fallthru
        _
      // Predicated region
      $region37: #{rpn_forward.1} parent=11 // pred_check
        %p296 = pneg %p190
      $region38: #{rpn_forward.1} parent=11 // pred_check_branch
        %298 = sbr.rel (%p296) target = $region40
      $region39: #{rpn_forward.1} parent=11 // pred_region
        _
      $region40: #{rpn_forward.1} parent=11 // pred_fallthru
        _
      // Predicated region
      $region41: #{rpn_forward.1} parent=11 // pred_check
        %p299 = pneg %p211
      $region42: #{rpn_forward.1} parent=11 // pred_check_branch
        %301 = sbr.rel (%p299) target = $region44
      $region43: #{rpn_forward.1} parent=11 // pred_region
        _
      $region44: #{rpn_forward.1} parent=11 // pred_fallthru
        _
    $region12: #{rpn_forward.1} parent=5 // pred_fallthru
      _
    %p302 = scmp.lt.s32.totalorder %s17, 2
    // Predicated region
    $region45: #{rpn_forward.1} parent=5 // pred_check
      %p303 = pneg %p302
    $region46: #{rpn_forward.1} parent=5 // pred_check_branch
      %305 = sbr.rel (%p303) target = $region48
    $region47: #{rpn_forward.1} parent=5 // pred_region
      // Predicated region
      $region49: #{rpn_forward.1} parent=47 // pred_check
        %p306 = pneg %p37
      $region50: #{rpn_forward.1} parent=47 // pred_check_branch
        %308 = sbr.rel (%p306) target = $region52
      $region51: #{rpn_forward.1} parent=47 // pred_region
        %s309 = smul.u32 16, %s17
        %p310 = scmp.lt.s32.totalorder %s309, 31
        %s311 = scalar_select %p310, %s309, 31
        %s312 = smul.addr %s311, 8
        %s313 = scalar_lea.vmem %s0, %s312
        %s314 = smul.u32 16, %s17
      $region52: #{rpn_forward.1} parent=47 // pred_fallthru
        _
    $region48: #{rpn_forward.1} parent=5 // pred_fallthru
      _
    %p315 = scmp.le.s32.totalorder 1, %s17
    %p316 = scmp.lt.s32.totalorder %s17, 3
    %p317 = pnand %p315, %p316
    %p318 = pneg %p317
    // Predicated region
    $region53: #{rpn_forward.1} parent=5 // pred_check
      _
    $region54: #{rpn_forward.1} parent=5 // pred_check_branch
      %320 = sbr.rel (%p317) target = $region56
    $region55: #{rpn_forward.1} parent=5 // pred_region
      %s321 = ssub.s32 %s17, 1
      %s322 = smul.u32 16, %s22
      %p323 = scmp.lt.s32.totalorder %s322, 31
      %s324 = scalar_select %p323, %s322, 31
      %s325 = smul.addr %s324, 8
      %s326 = scalar_lea.vmem %s0, %s325
      %p327 = pneg %p43
      %p328 = pneg %p40
      %p329 = pneg %p64
      %p330 = pneg %p61
      %p331 = pneg %p85
      %p332 = pneg %p82
      %p333 = pneg %p106
      %p334 = pneg %p103
      %p335 = pneg %p127
      %p336 = pneg %p124
      %p337 = pneg %p148
      %p338 = pneg %p145
      %p339 = pneg %p169
      %p340 = pneg %p166
      %p341 = pneg %p190
      %p342 = pneg %p187
      %p343 = pneg %p211
      %p344 = pneg %p208
      %p345 = pneg %p237
      %p346 = pneg %p234
      %s347 = smul.u32 16, %s22
      %p348 = scmp.lt.s32.totalorder %s347, 31
      %s349 = scalar_select %p348, %s347, 31
      %s350 = smul.addr %s349, 2
      %s351 = smul.addr %s350, 8
      %s352 = scalar_lea.vmem %s9, %s351
      %p353 = pneg %p263
      %p354 = pneg %p260
      %s355 = smul.u32 16, %s22
      %p356 = scmp.lt.s32.totalorder %s355, 31
      %s357 = scalar_select %p356, %s355, 31
      %s358 = smul.addr %s357, 8
      %s359 = scalar_lea.vmem %s10, %s358
      %s360 = smul.u32 16, %s22
      %p361 = scmp.lt.s32.totalorder %s360, 31
      %s362 = scalar_select %p361, %s360, 31
      %s363 = smul.addr %s362, 8
      %s364 = scalar_lea.vmem %s0, %s363
      %s365 = smul.u32 16, %s22
      %s366 = smul.u32 16, %s22
      %p367 = scmp.lt.s32.totalorder %s366, 31
      %s368 = scalar_select %p367, %s366, 31
      %s369 = smul.addr %s368, 2
      %s370 = smul.addr %s369, 8
      %s371 = scalar_lea.vmem %s9, %s370
      %s372 = smul.u32 16, %s22
      %s373 = smul.u32 16, %s22
      %p374 = scmp.lt.s32.totalorder %s373, 31
      %s375 = scalar_select %p374, %s373, 31
      %s376 = smul.addr %s375, 8
      %s377 = scalar_lea.vmem %s10, %s376
      %s378 = smul.u32 16, %s22
      %v380 = vld [vmem:[%s8] sm:$0xff]
      %v381 = vld [vmem:[%s8 + $0x8] sm:$0xff]
      %v382 = vld [vmem:[%s364] sm:$0xff]
      %v383 = vld [vmem:[%s364 + $0x8] sm:$0xff]
      %v384 = vld [vmem:[%s364 + $0x10] sm:$0xff]
      %v385 = vld [vmem:[%s364 + $0x18] sm:$0xff]
      %v386 = vld [vmem:[%s364 + $0x20] sm:$0xff]
      %v387 = vld [vmem:[%s364 + $0x28] sm:$0xff]
      %v388 = vld [vmem:[%s364 + $0x30] sm:$0xff]
      %v389 = vld [vmem:[%s364 + $0x38] sm:$0xff]
      %v390 = vld [vmem:[%s364 + $0x40] sm:$0xff]
      %v391 = vld [vmem:[%s364 + $0x48] sm:$0xff]
      %v392 = vld [vmem:[%s364 + $0x50] sm:$0xff]
      %v393 = vld [vmem:[%s364 + $0x58] sm:$0xff]
      %v394 = vld [vmem:[%s364 + $0x60] sm:$0xff]
      %v395 = vld [vmem:[%s364 + $0x68] sm:$0xff]
      %v396 = vld [vmem:[%s364 + $0x70] sm:$0xff]
      %v397 = vld [vmem:[%s364 + $0x78] sm:$0xff]
      %v398 = vld [vmem:[%s1] sm:$0xff]
      %v399 = vlaneseq
      %v400 = vshrl.u32 %v399, 7
      %v401 = vsub.s32 0, %v400
      %v402 = vrot.slane %v380, %v401
      %vm403 = vcmask 64512
      %v405 = vsel %vm403, %v382, 0
      %v408 = vsel %vm403, %v383, 0
      %v411 = vsel %vm403, %v384, 0
      %v414 = vsel %vm403, %v385, 0
      %v417 = vsel %vm403, %v386, 0
      %v420 = vsel %vm403, %v387, 0
      %v423 = vsel %vm403, %v388, 0
      %v426 = vsel %vm403, %v389, 0
      %v429 = vsel %vm403, %v390, 0
      %v432 = vsel %vm403, %v391, 0
      %v435 = vsel %vm403, %v392, 0
      %v438 = vsel %vm403, %v393, 0
      %v441 = vsel %vm403, %v394, 0
      %v444 = vsel %vm403, %v395, 0
      %v447 = vsel %vm403, %v396, 0
      %v450 = vsel %vm403, %v397, 0
      %452 = vmatprep.subr.mxu0 0.0
      %453 = vmatpush1.msra.mxu0 0.0
      %454 = vmatprep.subr.mxu0 0.0
      %455 = vmatpush1.msra.mxu0 0.0
      %456 = vmatprep.subr.mxu0 0.0
      %457 = vmatpush1.msra.mxu0 0.0
      %458 = vmatprep.subr.mxu0 0.0
      %459 = vmatpush1.msra.mxu0 0.0
      %460 = vmatprep.subr.mxu0 0.0
      %461 = vmatpush1.msra.mxu0 0.0
      %462 = vmatprep.subr.mxu0 0.0
      %463 = vmatpush1.msra.mxu0 0.0
      %464 = vmatprep.subr.mxu0 0.0
      %465 = vmatpush1.msra.mxu0 0.0
      %466 = vmatprep.subr.mxu0 0.0
      %467 = vmatpush1.msra.mxu0 0.0
      %468 = vmatprep.subr.mxu0 0.0
      %469 = vmatpush1.msra.mxu0 0.0
      %470 = vmatprep.subr.mxu0 0.0
      %471 = vmatpush1.msra.mxu0 0.0
      %472 = vmatprep.subr.mxu0 0.0
      %473 = vmatpush1.msra.mxu0 0.0
      %474 = vmatprep.subr.mxu0 0.0
      %475 = vmatpush1.msra.mxu0 0.0
      %476 = vmatprep.subr.mxu0 0.0
      %477 = vmatpush1.msra.mxu0 0.0
      %478 = vmatprep.subr.mxu0 0.0
      %479 = vmatpush1.msra.mxu0 0.0
      %480 = vmatprep.subr.mxu0 0.0
      %481 = vmatpush1.msra.mxu0 0.0
      %482 = vmatprep.subr.mxu0 0.0
      %483 = vmatpush1.msra.mxu0 %v398
      %484 = vmatprep.subr.mxu0 0.0
      %485 = vmatpush2.msra.mxu0 0.0
      %486 = vmatprep.subr.mxu0 0.0
      %487 = vmatpush2.msra.mxu0 0.0
      %488 = vmatprep.subr.mxu0 0.0
      %489 = vmatpush2.msra.mxu0 0.0
      %490 = vmatprep.subr.mxu0 0.0
      %491 = vmatpush2.msra.mxu0 0.0
      %492 = vmatprep.subr.mxu0 0.0
      %493 = vmatpush2.msra.mxu0 0.0
      %494 = vmatprep.subr.mxu0 0.0
      %495 = vmatpush2.msra.mxu0 0.0
      %496 = vmatprep.subr.mxu0 0.0
      %497 = vmatpush2.msra.mxu0 0.0
      %498 = vmatprep.subr.mxu0 0.0
      %499 = vmatpush2.msra.mxu0 0.0
      %500 = vmatprep.subr.mxu0 0.0
      %501 = vmatpush2.msra.mxu0 0.0
      %502 = vmatprep.subr.mxu0 0.0
      %503 = vmatpush2.msra.mxu0 0.0
      %504 = vmatprep.subr.mxu0 0.0
      %505 = vmatpush2.msra.mxu0 0.0
      %506 = vmatprep.subr.mxu0 0.0
      %507 = vmatpush2.msra.mxu0 0.0
      %508 = vmatprep.subr.mxu0 0.0
      %509 = vmatpush2.msra.mxu0 0.0
      %510 = vmatprep.subr.mxu0 0.0
      %511 = vmatpush2.msra.mxu0 0.0
      %512 = vmatprep.subr.mxu0 0.0
      %513 = vmatpush2.msra.mxu0 0.0
      %514 = vmatprep.subr.mxu0 0.0
      %515 = vmatpush2.msra.mxu0 0.0
      %516 = vmatprep.mubr.f32.mxu0 0.0
      %517 = vmatmul.mubr.f32.gmra.mxu0 %v405
      %v518 = vpop.f32.mrf.mxu0
      %v519 = vadd.f32 %v402, %v518
      %v520 = vpop.f32.mrf.mxu0
      %521 = vmatprep.mubr.f32.mxu0 0.0
      %522 = vmatmul.mubr.f32.gmra.mxu0 %v408
      %v523 = vpop.f32.mrf.mxu0
      %v524 = vadd.f32 %v402, %v523
      %v525 = vpop.f32.mrf.mxu0
      %526 = vmatprep.mubr.f32.mxu0 0.0
      %527 = vmatmul.mubr.f32.gmra.mxu0 %v411
      %v528 = vpop.f32.mrf.mxu0
      %v529 = vadd.f32 %v402, %v528
      %v530 = vpop.f32.mrf.mxu0
      %531 = vmatprep.mubr.f32.mxu0 0.0
      %532 = vmatmul.mubr.f32.gmra.mxu0 %v414
      %v533 = vpop.f32.mrf.mxu0
      %v534 = vadd.f32 %v402, %v533
      %v535 = vpop.f32.mrf.mxu0
      %536 = vmatprep.mubr.f32.mxu0 0.0
      %537 = vmatmul.mubr.f32.gmra.mxu0 %v417
      %v538 = vpop.f32.mrf.mxu0
      %v539 = vadd.f32 %v402, %v538
      %v540 = vpop.f32.mrf.mxu0
      %541 = vmatprep.mubr.f32.mxu0 0.0
      %542 = vmatmul.mubr.f32.gmra.mxu0 %v420
      %v543 = vpop.f32.mrf.mxu0
      %v544 = vadd.f32 %v402, %v543
      %v545 = vpop.f32.mrf.mxu0
      %546 = vmatprep.mubr.f32.mxu0 0.0
      %547 = vmatmul.mubr.f32.gmra.mxu0 %v423
      %v548 = vpop.f32.mrf.mxu0
      %v549 = vadd.f32 %v402, %v548
      %v550 = vpop.f32.mrf.mxu0
      %551 = vmatprep.mubr.f32.mxu0 0.0
      %552 = vmatmul.mubr.f32.gmra.mxu0 %v426
      %v553 = vpop.f32.mrf.mxu0
      %v554 = vadd.f32 %v402, %v553
      %v555 = vpop.f32.mrf.mxu0
      %556 = vmatprep.mubr.f32.mxu0 0.0
      %557 = vmatmul.mubr.f32.gmra.mxu0 %v429
      %v558 = vpop.f32.mrf.mxu0
      %v559 = vadd.f32 %v402, %v558
      %v560 = vpop.f32.mrf.mxu0
      %561 = vmatprep.mubr.f32.mxu0 0.0
      %562 = vmatmul.mubr.f32.gmra.mxu0 %v432
      %v563 = vpop.f32.mrf.mxu0
      %v564 = vadd.f32 %v402, %v563
      %v565 = vpop.f32.mrf.mxu0
      %566 = vmatprep.mubr.f32.mxu0 0.0
      %567 = vmatmul.mubr.f32.gmra.mxu0 %v435
      %v568 = vpop.f32.mrf.mxu0
      %v569 = vadd.f32 %v402, %v568
      %v570 = vpop.f32.mrf.mxu0
      %571 = vmatprep.mubr.f32.mxu0 0.0
      %572 = vmatmul.mubr.f32.gmra.mxu0 %v438
      %v573 = vpop.f32.mrf.mxu0
      %v574 = vadd.f32 %v402, %v573
      %v575 = vpop.f32.mrf.mxu0
      %576 = vmatprep.mubr.f32.mxu0 0.0
      %577 = vmatmul.mubr.f32.gmra.mxu0 %v441
      %v578 = vpop.f32.mrf.mxu0
      %v579 = vadd.f32 %v402, %v578
      %v580 = vpop.f32.mrf.mxu0
      %581 = vmatprep.mubr.f32.mxu0 0.0
      %582 = vmatmul.mubr.f32.gmra.mxu0 %v444
      %v583 = vpop.f32.mrf.mxu0
      %v584 = vadd.f32 %v402, %v583
      %v585 = vpop.f32.mrf.mxu0
      %586 = vmatprep.mubr.f32.mxu0 0.0
      %587 = vmatmul.mubr.f32.gmra.mxu0 %v447
      %v588 = vpop.f32.mrf.mxu0
      %v589 = vadd.f32 %v402, %v588
      %v590 = vpop.f32.mrf.mxu0
      %591 = vmatprep.mubr.f32.mxu0 0.0
      %592 = vmatmul.mubr.f32.gmra.mxu0 %v450
      %v593 = vpop.f32.mrf.mxu0
      %v594 = vadd.f32 %v402, %v593
      %v595 = vpop.f32.mrf.mxu0
      %596 = vdwg.mxu0
      %vm597 = vcmp.gt.f32.partialorder %v519, 0.0
      %vm598 = vcmp.gt.f32.partialorder %v524, 0.0
      %vm599 = vcmp.gt.f32.partialorder %v529, 0.0
      %vm600 = vcmp.gt.f32.partialorder %v534, 0.0
      %vm601 = vcmp.gt.f32.partialorder %v539, 0.0
      %vm602 = vcmp.gt.f32.partialorder %v544, 0.0
      %vm603 = vcmp.gt.f32.partialorder %v549, 0.0
      %vm604 = vcmp.gt.f32.partialorder %v554, 0.0
      %vm605 = vcmp.gt.f32.partialorder %v559, 0.0
      %vm606 = vcmp.gt.f32.partialorder %v564, 0.0
      %vm607 = vcmp.gt.f32.partialorder %v569, 0.0
      %vm608 = vcmp.gt.f32.partialorder %v574, 0.0
      %vm609 = vcmp.gt.f32.partialorder %v579, 0.0
      %vm610 = vcmp.gt.f32.partialorder %v584, 0.0
      %vm611 = vcmp.gt.f32.partialorder %v589, 0.0
      %vm612 = vcmp.gt.f32.partialorder %v594, 0.0
      %v613 = vmul.f32 %v519, 1.442695
      %v614 = vpow.pop %v613
      %v615 = vmul.f32 %v524, 1.442695
      %v616 = vpow.pop %v615
      %v617 = vmul.f32 %v529, 1.442695
      %v618 = vpow.pop %v617
      %v619 = vmul.f32 %v534, 1.442695
      %v620 = vpow.pop %v619
      %v621 = vmul.f32 %v539, 1.442695
      %v622 = vpow.pop %v621
      %v623 = vmul.f32 %v544, 1.442695
      %v624 = vpow.pop %v623
      %v625 = vmul.f32 %v549, 1.442695
      %v626 = vpow.pop %v625
      %v627 = vmul.f32 %v554, 1.442695
      %v628 = vpow.pop %v627
      %v629 = vmul.f32 %v559, 1.442695
      %v630 = vpow.pop %v629
      %v631 = vmul.f32 %v564, 1.442695
      %v632 = vpow.pop %v631
      %v633 = vmul.f32 %v569, 1.442695
      %v634 = vpow.pop %v633
      %v635 = vmul.f32 %v574, 1.442695
      %v636 = vpow.pop %v635
      %v637 = vmul.f32 %v579, 1.442695
      %v638 = vpow.pop %v637
      %v639 = vmul.f32 %v584, 1.442695
      %v640 = vpow.pop %v639
      %v641 = vmul.f32 %v589, 1.442695
      %v642 = vpow.pop %v641
      %v643 = vmul.f32 %v594, 1.442695
      %v644 = vpow.pop %v643
      %v645 = vsub.f32 %v614, 1.0
      %v646 = vsub.f32 %v616, 1.0
      %v647 = vsub.f32 %v618, 1.0
      %v648 = vsub.f32 %v620, 1.0
      %v649 = vsub.f32 %v622, 1.0
      %v650 = vsub.f32 %v624, 1.0
      %v651 = vsub.f32 %v626, 1.0
      %v652 = vsub.f32 %v628, 1.0
      %v653 = vsub.f32 %v630, 1.0
      %v654 = vsub.f32 %v632, 1.0
      %v655 = vsub.f32 %v634, 1.0
      %v656 = vsub.f32 %v636, 1.0
      %v657 = vsub.f32 %v638, 1.0
      %v658 = vsub.f32 %v640, 1.0
      %v659 = vsub.f32 %v642, 1.0
      %v660 = vsub.f32 %v644, 1.0
      %v661 = vsel %vm597, %v519, %v645
      %v662 = vsel %vm598, %v524, %v646
      %v663 = vsel %vm599, %v529, %v647
      %v664 = vsel %vm600, %v534, %v648
      %v665 = vsel %vm601, %v539, %v649
      %v666 = vsel %vm602, %v544, %v650
      %v667 = vsel %vm603, %v549, %v651
      %v668 = vsel %vm604, %v554, %v652
      %v669 = vsel %vm605, %v559, %v653
      %v670 = vsel %vm606, %v564, %v654
      %v671 = vsel %vm607, %v569, %v655
      %v672 = vsel %vm608, %v574, %v656
      %v673 = vsel %vm609, %v579, %v657
      %v674 = vsel %vm610, %v584, %v658
      %v675 = vsel %vm611, %v589, %v659
      %v676 = vsel %vm612, %v594, %v660
      %v677 = vpack.c.bf16 %v662, %v661
      %v678 = vpack.c.bf16 %v664, %v663
      %v679 = vpack.c.bf16 %v666, %v665
      %v680 = vpack.c.bf16 %v668, %v667
      %v681 = vpack.c.bf16 %v670, %v669
      %v682 = vpack.c.bf16 %v672, %v671
      %v683 = vpack.c.bf16 %v674, %v673
      %v684 = vpack.c.bf16 %v676, %v675
      %v685 = vld [vmem:[%s2] sm:$0xf]
      %v686 = vld [vmem:[%s2 + $0x4] sm:$0xf]
      %v687 = vld [vmem:[%s2 + $0x8] sm:$0xf]
      %v688 = vld [vmem:[%s2 + $0xc] sm:$0xf]
      %v689 = vld [vmem:[%s2 + $0x10] sm:$0xf]
      %v690 = vld [vmem:[%s2 + $0x14] sm:$0xf]
      %v691 = vld [vmem:[%s2 + $0x18] sm:$0xf]
      %v692 = vld [vmem:[%s2 + $0x1c] sm:$0xf]
      %v693 = vld [vmem:[%s2 + $0x20] sm:$0xf]
      %v694 = vld [vmem:[%s2 + $0x24] sm:$0xf]
      %v695 = vld [vmem:[%s2 + $0x28] sm:$0xf]
      %v696 = vld [vmem:[%s2 + $0x2c] sm:$0xf]
      %v697 = vld [vmem:[%s2 + $0x30] sm:$0xf]
      %v698 = vld [vmem:[%s2 + $0x34] sm:$0xf]
      %v699 = vld [vmem:[%s2 + $0x38] sm:$0xf]
      %v700 = vld [vmem:[%s2 + $0x3c] sm:$0xf]
      %v701 = vlaneseq
      %v702 = vshrl.u32 %v701, 7
      %v703 = vsub.s32 1, %v702
      %v704 = vrot.slane %v380, %v703
      %v721 = vunpack.c.l.b16 %v685
      %v722 = vunpack.c.l.b16 %v686
      %v723 = vunpack.c.l.b16 %v687
      %v724 = vunpack.c.l.b16 %v688
      %v725 = vunpack.c.l.b16 %v689
      %v726 = vunpack.c.l.b16 %v690
      %v727 = vunpack.c.l.b16 %v691
      %v728 = vunpack.c.l.b16 %v692
      %v729 = vunpack.c.l.b16 %v693
      %v730 = vunpack.c.l.b16 %v694
      %v731 = vunpack.c.l.b16 %v695
      %v732 = vunpack.c.l.b16 %v696
      %v733 = vunpack.c.l.b16 %v697
      %v734 = vunpack.c.l.b16 %v698
      %v735 = vunpack.c.l.b16 %v699
      %v736 = vunpack.c.l.b16 %v700
      %v737 = vpack.c.b16 %v722, %v721
      %v738 = vpack.c.b16 %v724, %v723
      %v739 = vpack.c.b16 %v726, %v725
      %v740 = vpack.c.b16 %v728, %v727
      %v741 = vpack.c.b16 %v730, %v729
      %v742 = vpack.c.b16 %v732, %v731
      %v743 = vpack.c.b16 %v734, %v733
      %v744 = vpack.c.b16 %v736, %v735
      %753 = vmatprep.subr.bf16.mxu0 0
      %754 = vmatpush1.bf16.msra.mxu0 %v744
      %755 = vmatprep.subr.bf16.mxu0 0
      %756 = vmatpush1.bf16.msra.mxu0 %v743
      %757 = vmatprep.subr.bf16.mxu0 0
      %758 = vmatpush1.bf16.msra.mxu0 %v742
      %759 = vmatprep.subr.bf16.mxu0 0
      %760 = vmatpush1.bf16.msra.mxu0 %v741
      %761 = vmatprep.subr.bf16.mxu0 0
      %762 = vmatpush1.bf16.msra.mxu0 %v740
      %763 = vmatprep.subr.bf16.mxu0 0
      %764 = vmatpush1.bf16.msra.mxu0 %v739
      %765 = vmatprep.subr.bf16.mxu0 0
      %766 = vmatpush1.bf16.msra.mxu0 %v738
      %767 = vmatprep.subr.bf16.mxu0 0
      %768 = vmatpush1.bf16.msra.mxu0 %v737
      %769 = vmatprep.subr.bf16.mxu0 0
      %770 = vmatpush2.bf16.msra.mxu0 0
      %771 = vmatprep.subr.bf16.mxu0 0
      %772 = vmatpush2.bf16.msra.mxu0 0
      %773 = vmatprep.subr.bf16.mxu0 0
      %774 = vmatpush2.bf16.msra.mxu0 0
      %775 = vmatprep.subr.bf16.mxu0 0
      %776 = vmatpush2.bf16.msra.mxu0 0
      %777 = vmatprep.subr.bf16.mxu0 0
      %778 = vmatpush2.bf16.msra.mxu0 0
      %779 = vmatprep.subr.bf16.mxu0 0
      %780 = vmatpush2.bf16.msra.mxu0 0
      %781 = vmatprep.subr.bf16.mxu0 0
      %782 = vmatpush2.bf16.msra.mxu0 0
      %783 = vmatprep.subr.bf16.mxu0 0
      %784 = vmatpush2.bf16.msra.mxu0 0
      %785 = vmatprep.mubr.bf16.mxu0 0
      %786 = vmatmul.mubr.bf16.gmra.mxu0 %v677
      %v787 = vpop.f32.mrf.mxu0
      %v788 = vadd.f32 %v704, %v787
      %v789 = vpop.f32.mrf.mxu0
      %v790 = vpop.f32.mrf.mxu0
      %v791 = vadd.f32 %v704, %v790
      %v792 = vpop.f32.mrf.mxu0
      %793 = vmatprep.mubr.bf16.mxu0 0
      %794 = vmatmul.mubr.bf16.gmra.mxu0 %v678
      %v795 = vpop.f32.mrf.mxu0
      %v796 = vadd.f32 %v704, %v795
      %v797 = vpop.f32.mrf.mxu0
      %v798 = vpop.f32.mrf.mxu0
      %v799 = vadd.f32 %v704, %v798
      %v800 = vpop.f32.mrf.mxu0
      %801 = vmatprep.mubr.bf16.mxu0 0
      %802 = vmatmul.mubr.bf16.gmra.mxu0 %v679
      %v803 = vpop.f32.mrf.mxu0
      %v804 = vadd.f32 %v704, %v803
      %v805 = vpop.f32.mrf.mxu0
      %v806 = vpop.f32.mrf.mxu0
      %v807 = vadd.f32 %v704, %v806
      %v808 = vpop.f32.mrf.mxu0
      %809 = vmatprep.mubr.bf16.mxu0 0
      %810 = vmatmul.mubr.bf16.gmra.mxu0 %v680
      %v811 = vpop.f32.mrf.mxu0
      %v812 = vadd.f32 %v704, %v811
      %v813 = vpop.f32.mrf.mxu0
      %v814 = vpop.f32.mrf.mxu0
      %v815 = vadd.f32 %v704, %v814
      %v816 = vpop.f32.mrf.mxu0
      %817 = vmatprep.mubr.bf16.mxu0 0
      %818 = vmatmul.mubr.bf16.gmra.mxu0 %v681
      %v819 = vpop.f32.mrf.mxu0
      %v820 = vadd.f32 %v704, %v819
      %v821 = vpop.f32.mrf.mxu0
      %v822 = vpop.f32.mrf.mxu0
      %v823 = vadd.f32 %v704, %v822
      %v824 = vpop.f32.mrf.mxu0
      %825 = vmatprep.mubr.bf16.mxu0 0
      %826 = vmatmul.mubr.bf16.gmra.mxu0 %v682
      %v827 = vpop.f32.mrf.mxu0
      %v828 = vadd.f32 %v704, %v827
      %v829 = vpop.f32.mrf.mxu0
      %v830 = vpop.f32.mrf.mxu0
      %v831 = vadd.f32 %v704, %v830
      %v832 = vpop.f32.mrf.mxu0
      %833 = vmatprep.mubr.bf16.mxu0 0
      %834 = vmatmul.mubr.bf16.gmra.mxu0 %v683
      %v835 = vpop.f32.mrf.mxu0
      %v836 = vadd.f32 %v704, %v835
      %v837 = vpop.f32.mrf.mxu0
      %v838 = vpop.f32.mrf.mxu0
      %v839 = vadd.f32 %v704, %v838
      %v840 = vpop.f32.mrf.mxu0
      %841 = vmatprep.mubr.bf16.mxu0 0
      %842 = vmatmul.mubr.bf16.gmra.mxu0 %v684
      %v843 = vpop.f32.mrf.mxu0
      %v844 = vadd.f32 %v704, %v843
      %v845 = vpop.f32.mrf.mxu0
      %v846 = vpop.f32.mrf.mxu0
      %v847 = vadd.f32 %v704, %v846
      %v848 = vpop.f32.mrf.mxu0
      %849 = vdwg.mxu0
      %vm850 = vcmp.gt.f32.partialorder %v788, 0.0
      %vm851 = vcmp.gt.f32.partialorder %v791, 0.0
      %vm852 = vcmp.gt.f32.partialorder %v796, 0.0
      %vm853 = vcmp.gt.f32.partialorder %v799, 0.0
      %vm854 = vcmp.gt.f32.partialorder %v804, 0.0
      %vm855 = vcmp.gt.f32.partialorder %v807, 0.0
      %vm856 = vcmp.gt.f32.partialorder %v812, 0.0
      %vm857 = vcmp.gt.f32.partialorder %v815, 0.0
      %vm858 = vcmp.gt.f32.partialorder %v820, 0.0
      %vm859 = vcmp.gt.f32.partialorder %v823, 0.0
      %vm860 = vcmp.gt.f32.partialorder %v828, 0.0
      %vm861 = vcmp.gt.f32.partialorder %v831, 0.0
      %vm862 = vcmp.gt.f32.partialorder %v836, 0.0
      %vm863 = vcmp.gt.f32.partialorder %v839, 0.0
      %vm864 = vcmp.gt.f32.partialorder %v844, 0.0
      %vm865 = vcmp.gt.f32.partialorder %v847, 0.0
      %v866 = vmul.f32 %v788, 1.442695
      %v867 = vpow.pop %v866
      %v868 = vmul.f32 %v791, 1.442695
      %v869 = vpow.pop %v868
      %v870 = vmul.f32 %v796, 1.442695
      %v871 = vpow.pop %v870
      %v872 = vmul.f32 %v799, 1.442695
      %v873 = vpow.pop %v872
      %v874 = vmul.f32 %v804, 1.442695
      %v875 = vpow.pop %v874
      %v876 = vmul.f32 %v807, 1.442695
      %v877 = vpow.pop %v876
      %v878 = vmul.f32 %v812, 1.442695
      %v879 = vpow.pop %v878
      %v880 = vmul.f32 %v815, 1.442695
      %v881 = vpow.pop %v880
      %v882 = vmul.f32 %v820, 1.442695
      %v883 = vpow.pop %v882
      %v884 = vmul.f32 %v823, 1.442695
      %v885 = vpow.pop %v884
      %v886 = vmul.f32 %v828, 1.442695
      %v887 = vpow.pop %v886
      %v888 = vmul.f32 %v831, 1.442695
      %v889 = vpow.pop %v888
      %v890 = vmul.f32 %v836, 1.442695
      %v891 = vpow.pop %v890
      %v892 = vmul.f32 %v839, 1.442695
      %v893 = vpow.pop %v892
      %v894 = vmul.f32 %v844, 1.442695
      %v895 = vpow.pop %v894
      %v896 = vmul.f32 %v847, 1.442695
      %v897 = vpow.pop %v896
      %v898 = vsub.f32 %v867, 1.0
      %v899 = vsub.f32 %v869, 1.0
      %v900 = vsub.f32 %v871, 1.0
      %v901 = vsub.f32 %v873, 1.0
      %v902 = vsub.f32 %v875, 1.0
      %v903 = vsub.f32 %v877, 1.0
      %v904 = vsub.f32 %v879, 1.0
      %v905 = vsub.f32 %v881, 1.0
      %v906 = vsub.f32 %v883, 1.0
      %v907 = vsub.f32 %v885, 1.0
      %v908 = vsub.f32 %v887, 1.0
      %v909 = vsub.f32 %v889, 1.0
      %v910 = vsub.f32 %v891, 1.0
      %v911 = vsub.f32 %v893, 1.0
      %v912 = vsub.f32 %v895, 1.0
      %v913 = vsub.f32 %v897, 1.0
      %v914 = vsel %vm850, %v788, %v898
      %v915 = vsel %vm851, %v791, %v899
      %v916 = vsel %vm852, %v796, %v900
      %v917 = vsel %vm853, %v799, %v901
      %v918 = vsel %vm854, %v804, %v902
      %v919 = vsel %vm855, %v807, %v903
      %v920 = vsel %vm856, %v812, %v904
      %v921 = vsel %vm857, %v815, %v905
      %v922 = vsel %vm858, %v820, %v906
      %v923 = vsel %vm859, %v823, %v907
      %v924 = vsel %vm860, %v828, %v908
      %v925 = vsel %vm861, %v831, %v909
      %v926 = vsel %vm862, %v836, %v910
      %v927 = vsel %vm863, %v839, %v911
      %v928 = vsel %vm864, %v844, %v912
      %v929 = vsel %vm865, %v847, %v913
      %v930 = vpack.c.bf16 %v915, %v914
      %v931 = vpack.c.bf16 %v917, %v916
      %v932 = vpack.c.bf16 %v919, %v918
      %v933 = vpack.c.bf16 %v921, %v920
      %v934 = vpack.c.bf16 %v923, %v922
      %v935 = vpack.c.bf16 %v925, %v924
      %v936 = vpack.c.bf16 %v927, %v926
      %v937 = vpack.c.bf16 %v929, %v928
      %v938 = vld [vmem:[%s3] sm:$0xf]
      %v939 = vld [vmem:[%s3 + $0x4] sm:$0xf]
      %v940 = vld [vmem:[%s3 + $0x8] sm:$0xf]
      %v941 = vld [vmem:[%s3 + $0xc] sm:$0xf]
      %v942 = vld [vmem:[%s3 + $0x10] sm:$0xf]
      %v943 = vld [vmem:[%s3 + $0x14] sm:$0xf]
      %v944 = vld [vmem:[%s3 + $0x18] sm:$0xf]
      %v945 = vld [vmem:[%s3 + $0x1c] sm:$0xf]
      %v946 = vld [vmem:[%s3 + $0x20] sm:$0xf]
      %v947 = vld [vmem:[%s3 + $0x24] sm:$0xf]
      %v948 = vld [vmem:[%s3 + $0x28] sm:$0xf]
      %v949 = vld [vmem:[%s3 + $0x2c] sm:$0xf]
      %v950 = vld [vmem:[%s3 + $0x30] sm:$0xf]
      %v951 = vld [vmem:[%s3 + $0x34] sm:$0xf]
      %v952 = vld [vmem:[%s3 + $0x38] sm:$0xf]
      %v953 = vld [vmem:[%s3 + $0x3c] sm:$0xf]
      %v954 = vlaneseq
      %v955 = vshrl.u32 %v954, 7
      %v956 = vsub.s32 2, %v955
      %v957 = vrot.slane %v380, %v956
      %v974 = vunpack.c.l.b16 %v938
      %v975 = vunpack.c.l.b16 %v939
      %v976 = vunpack.c.l.b16 %v940
      %v977 = vunpack.c.l.b16 %v941
      %v978 = vunpack.c.l.b16 %v942
      %v979 = vunpack.c.l.b16 %v943
      %v980 = vunpack.c.l.b16 %v944
      %v981 = vunpack.c.l.b16 %v945
      %v982 = vunpack.c.l.b16 %v946
      %v983 = vunpack.c.l.b16 %v947
      %v984 = vunpack.c.l.b16 %v948
      %v985 = vunpack.c.l.b16 %v949
      %v986 = vunpack.c.l.b16 %v950
      %v987 = vunpack.c.l.b16 %v951
      %v988 = vunpack.c.l.b16 %v952
      %v989 = vunpack.c.l.b16 %v953
      %v990 = vpack.c.b16 %v975, %v974
      %v991 = vpack.c.b16 %v977, %v976
      %v992 = vpack.c.b16 %v979, %v978
      %v993 = vpack.c.b16 %v981, %v980
      %v994 = vpack.c.b16 %v983, %v982
      %v995 = vpack.c.b16 %v985, %v984
      %v996 = vpack.c.b16 %v987, %v986
      %v997 = vpack.c.b16 %v989, %v988
      %1006 = vmatprep.subr.bf16.mxu0 0
      %1007 = vmatpush1.bf16.msra.mxu0 %v997
      %1008 = vmatprep.subr.bf16.mxu0 0
      %1009 = vmatpush1.bf16.msra.mxu0 %v996
      %1010 = vmatprep.subr.bf16.mxu0 0
      %1011 = vmatpush1.bf16.msra.mxu0 %v995
      %1012 = vmatprep.subr.bf16.mxu0 0
      %1013 = vmatpush1.bf16.msra.mxu0 %v994
      %1014 = vmatprep.subr.bf16.mxu0 0
      %1015 = vmatpush1.bf16.msra.mxu0 %v993
      %1016 = vmatprep.subr.bf16.mxu0 0
      %1017 = vmatpush1.bf16.msra.mxu0 %v992
      %1018 = vmatprep.subr.bf16.mxu0 0
      %1019 = vmatpush1.bf16.msra.mxu0 %v991
      %1020 = vmatprep.subr.bf16.mxu0 0
      %1021 = vmatpush1.bf16.msra.mxu0 %v990
      %1022 = vmatprep.subr.bf16.mxu0 0
      %1023 = vmatpush2.bf16.msra.mxu0 0
      %1024 = vmatprep.subr.bf16.mxu0 0
      %1025 = vmatpush2.bf16.msra.mxu0 0
      %1026 = vmatprep.subr.bf16.mxu0 0
      %1027 = vmatpush2.bf16.msra.mxu0 0
      %1028 = vmatprep.subr.bf16.mxu0 0
      %1029 = vmatpush2.bf16.msra.mxu0 0
      %1030 = vmatprep.subr.bf16.mxu0 0
      %1031 = vmatpush2.bf16.msra.mxu0 0
      %1032 = vmatprep.subr.bf16.mxu0 0
      %1033 = vmatpush2.bf16.msra.mxu0 0
      %1034 = vmatprep.subr.bf16.mxu0 0
      %1035 = vmatpush2.bf16.msra.mxu0 0
      %1036 = vmatprep.subr.bf16.mxu0 0
      %1037 = vmatpush2.bf16.msra.mxu0 0
      %1038 = vmatprep.mubr.bf16.mxu0 0
      %1039 = vmatmul.mubr.bf16.gmra.mxu0 %v930
      %v1040 = vpop.f32.mrf.mxu0
      %v1041 = vadd.f32 %v957, %v1040
      %v1042 = vpop.f32.mrf.mxu0
      %v1043 = vpop.f32.mrf.mxu0
      %v1044 = vadd.f32 %v957, %v1043
      %v1045 = vpop.f32.mrf.mxu0
      %1046 = vmatprep.mubr.bf16.mxu0 0
      %1047 = vmatmul.mubr.bf16.gmra.mxu0 %v931
      %v1048 = vpop.f32.mrf.mxu0
      %v1049 = vadd.f32 %v957, %v1048
      %v1050 = vpop.f32.mrf.mxu0
      %v1051 = vpop.f32.mrf.mxu0
      %v1052 = vadd.f32 %v957, %v1051
      %v1053 = vpop.f32.mrf.mxu0
      %1054 = vmatprep.mubr.bf16.mxu0 0
      %1055 = vmatmul.mubr.bf16.gmra.mxu0 %v932
      %v1056 = vpop.f32.mrf.mxu0
      %v1057 = vadd.f32 %v957, %v1056
      %v1058 = vpop.f32.mrf.mxu0
      %v1059 = vpop.f32.mrf.mxu0
      %v1060 = vadd.f32 %v957, %v1059
      %v1061 = vpop.f32.mrf.mxu0
      %1062 = vmatprep.mubr.bf16.mxu0 0
      %1063 = vmatmul.mubr.bf16.gmra.mxu0 %v933
      %v1064 = vpop.f32.mrf.mxu0
      %v1065 = vadd.f32 %v957, %v1064
      %v1066 = vpop.f32.mrf.mxu0
      %v1067 = vpop.f32.mrf.mxu0
      %v1068 = vadd.f32 %v957, %v1067
      %v1069 = vpop.f32.mrf.mxu0
      %1070 = vmatprep.mubr.bf16.mxu0 0
      %1071 = vmatmul.mubr.bf16.gmra.mxu0 %v934
      %v1072 = vpop.f32.mrf.mxu0
      %v1073 = vadd.f32 %v957, %v1072
      %v1074 = vpop.f32.mrf.mxu0
      %v1075 = vpop.f32.mrf.mxu0
      %v1076 = vadd.f32 %v957, %v1075
      %v1077 = vpop.f32.mrf.mxu0
      %1078 = vmatprep.mubr.bf16.mxu0 0
      %1079 = vmatmul.mubr.bf16.gmra.mxu0 %v935
      %v1080 = vpop.f32.mrf.mxu0
      %v1081 = vadd.f32 %v957, %v1080
      %v1082 = vpop.f32.mrf.mxu0
      %v1083 = vpop.f32.mrf.mxu0
      %v1084 = vadd.f32 %v957, %v1083
      %v1085 = vpop.f32.mrf.mxu0
      %1086 = vmatprep.mubr.bf16.mxu0 0
      %1087 = vmatmul.mubr.bf16.gmra.mxu0 %v936
      %v1088 = vpop.f32.mrf.mxu0
      %v1089 = vadd.f32 %v957, %v1088
      %v1090 = vpop.f32.mrf.mxu0
      %v1091 = vpop.f32.mrf.mxu0
      %v1092 = vadd.f32 %v957, %v1091
      %v1093 = vpop.f32.mrf.mxu0
      %1094 = vmatprep.mubr.bf16.mxu0 0
      %1095 = vmatmul.mubr.bf16.gmra.mxu0 %v937
      %v1096 = vpop.f32.mrf.mxu0
      %v1097 = vadd.f32 %v957, %v1096
      %v1098 = vpop.f32.mrf.mxu0
      %v1099 = vpop.f32.mrf.mxu0
      %v1100 = vadd.f32 %v957, %v1099
      %v1101 = vpop.f32.mrf.mxu0
      %1102 = vdwg.mxu0
      %vm1103 = vcmp.gt.f32.partialorder %v1041, 0.0
      %vm1104 = vcmp.gt.f32.partialorder %v1044, 0.0
      %vm1105 = vcmp.gt.f32.partialorder %v1049, 0.0
      %vm1106 = vcmp.gt.f32.partialorder %v1052, 0.0
      %vm1107 = vcmp.gt.f32.partialorder %v1057, 0.0
      %vm1108 = vcmp.gt.f32.partialorder %v1060, 0.0
      %vm1109 = vcmp.gt.f32.partialorder %v1065, 0.0
      %vm1110 = vcmp.gt.f32.partialorder %v1068, 0.0
      %vm1111 = vcmp.gt.f32.partialorder %v1073, 0.0
      %vm1112 = vcmp.gt.f32.partialorder %v1076, 0.0
      %vm1113 = vcmp.gt.f32.partialorder %v1081, 0.0
      %vm1114 = vcmp.gt.f32.partialorder %v1084, 0.0
      %vm1115 = vcmp.gt.f32.partialorder %v1089, 0.0
      %vm1116 = vcmp.gt.f32.partialorder %v1092, 0.0
      %vm1117 = vcmp.gt.f32.partialorder %v1097, 0.0
      %vm1118 = vcmp.gt.f32.partialorder %v1100, 0.0
      %v1119 = vmul.f32 %v1041, 1.442695
      %v1120 = vpow.pop %v1119
      %v1121 = vmul.f32 %v1044, 1.442695
      %v1122 = vpow.pop %v1121
      %v1123 = vmul.f32 %v1049, 1.442695
      %v1124 = vpow.pop %v1123
      %v1125 = vmul.f32 %v1052, 1.442695
      %v1126 = vpow.pop %v1125
      %v1127 = vmul.f32 %v1057, 1.442695
      %v1128 = vpow.pop %v1127
      %v1129 = vmul.f32 %v1060, 1.442695
      %v1130 = vpow.pop %v1129
      %v1131 = vmul.f32 %v1065, 1.442695
      %v1132 = vpow.pop %v1131
      %v1133 = vmul.f32 %v1068, 1.442695
      %v1134 = vpow.pop %v1133
      %v1135 = vmul.f32 %v1073, 1.442695
      %v1136 = vpow.pop %v1135
      %v1137 = vmul.f32 %v1076, 1.442695
      %v1138 = vpow.pop %v1137
      %v1139 = vmul.f32 %v1081, 1.442695
      %v1140 = vpow.pop %v1139
      %v1141 = vmul.f32 %v1084, 1.442695
      %v1142 = vpow.pop %v1141
      %v1143 = vmul.f32 %v1089, 1.442695
      %v1144 = vpow.pop %v1143
      %v1145 = vmul.f32 %v1092, 1.442695
      %v1146 = vpow.pop %v1145
      %v1147 = vmul.f32 %v1097, 1.442695
      %v1148 = vpow.pop %v1147
      %v1149 = vmul.f32 %v1100, 1.442695
      %v1150 = vpow.pop %v1149
      %v1151 = vsub.f32 %v1120, 1.0
      %v1152 = vsub.f32 %v1122, 1.0
      %v1153 = vsub.f32 %v1124, 1.0
      %v1154 = vsub.f32 %v1126, 1.0
      %v1155 = vsub.f32 %v1128, 1.0
      %v1156 = vsub.f32 %v1130, 1.0
      %v1157 = vsub.f32 %v1132, 1.0
      %v1158 = vsub.f32 %v1134, 1.0
      %v1159 = vsub.f32 %v1136, 1.0
      %v1160 = vsub.f32 %v1138, 1.0
      %v1161 = vsub.f32 %v1140, 1.0
      %v1162 = vsub.f32 %v1142, 1.0
      %v1163 = vsub.f32 %v1144, 1.0
      %v1164 = vsub.f32 %v1146, 1.0
      %v1165 = vsub.f32 %v1148, 1.0
      %v1166 = vsub.f32 %v1150, 1.0
      %v1167 = vsel %vm1103, %v1041, %v1151
      %v1168 = vsel %vm1104, %v1044, %v1152
      %v1169 = vsel %vm1105, %v1049, %v1153
      %v1170 = vsel %vm1106, %v1052, %v1154
      %v1171 = vsel %vm1107, %v1057, %v1155
      %v1172 = vsel %vm1108, %v1060, %v1156
      %v1173 = vsel %vm1109, %v1065, %v1157
      %v1174 = vsel %vm1110, %v1068, %v1158
      %v1175 = vsel %vm1111, %v1073, %v1159
      %v1176 = vsel %vm1112, %v1076, %v1160
      %v1177 = vsel %vm1113, %v1081, %v1161
      %v1178 = vsel %vm1114, %v1084, %v1162
      %v1179 = vsel %vm1115, %v1089, %v1163
      %v1180 = vsel %vm1116, %v1092, %v1164
      %v1181 = vsel %vm1117, %v1097, %v1165
      %v1182 = vsel %vm1118, %v1100, %v1166
      %v1183 = vpack.c.bf16 %v1168, %v1167
      %v1184 = vpack.c.bf16 %v1170, %v1169
      %v1185 = vpack.c.bf16 %v1172, %v1171
      %v1186 = vpack.c.bf16 %v1174, %v1173
      %v1187 = vpack.c.bf16 %v1176, %v1175
      %v1188 = vpack.c.bf16 %v1178, %v1177
      %v1189 = vpack.c.bf16 %v1180, %v1179
      %v1190 = vpack.c.bf16 %v1182, %v1181
      %v1191 = vld [vmem:[%s4] sm:$0xff]
      %v1192 = vld [vmem:[%s4 + $0x8] sm:$0xff]
      %v1193 = vld [vmem:[%s4 + $0x10] sm:$0xff]
      %v1194 = vld [vmem:[%s4 + $0x18] sm:$0xff]
      %v1195 = vld [vmem:[%s4 + $0x20] sm:$0xff]
      %v1196 = vld [vmem:[%s4 + $0x28] sm:$0xff]
      %v1197 = vld [vmem:[%s4 + $0x30] sm:$0xff]
      %v1198 = vld [vmem:[%s4 + $0x38] sm:$0xff]
      %v1199 = vld [vmem:[%s4 + $0x40] sm:$0xff]
      %v1200 = vld [vmem:[%s4 + $0x48] sm:$0xff]
      %v1201 = vld [vmem:[%s4 + $0x50] sm:$0xff]
      %v1202 = vld [vmem:[%s4 + $0x58] sm:$0xff]
      %v1203 = vld [vmem:[%s4 + $0x60] sm:$0xff]
      %v1204 = vld [vmem:[%s4 + $0x68] sm:$0xff]
      %v1205 = vld [vmem:[%s4 + $0x70] sm:$0xff]
      %v1206 = vld [vmem:[%s4 + $0x78] sm:$0xff]
      %v1207 = vlaneseq
      %v1208 = vshrl.u32 %v1207, 7
      %v1209 = vsub.s32 3, %v1208
      %v1210 = vrot.slane %v380, %v1209
      %v1211 = vlaneseq
      %v1212 = vshrl.u32 %v1211, 7
      %v1213 = vsub.s32 3, %v1212
      %v1214 = vrot.slane %v381, %v1213
      %v1231 = vunpack.c.l.b16 %v1191
      %v1232 = vunpack.c.h.b16 %v1191
      %v1233 = vunpack.c.l.b16 %v1192
      %v1234 = vunpack.c.h.b16 %v1192
      %v1235 = vunpack.c.l.b16 %v1193
      %v1236 = vunpack.c.h.b16 %v1193
      %v1237 = vunpack.c.l.b16 %v1194
      %v1238 = vunpack.c.h.b16 %v1194
      %v1239 = vunpack.c.l.b16 %v1195
      %v1240 = vunpack.c.h.b16 %v1195
      %v1241 = vunpack.c.l.b16 %v1196
      %v1242 = vunpack.c.h.b16 %v1196
      %v1243 = vunpack.c.l.b16 %v1197
      %v1244 = vunpack.c.h.b16 %v1197
      %v1245 = vunpack.c.l.b16 %v1198
      %v1246 = vunpack.c.h.b16 %v1198
      %v1247 = vunpack.c.l.b16 %v1199
      %v1248 = vunpack.c.h.b16 %v1199
      %v1249 = vunpack.c.l.b16 %v1200
      %v1250 = vunpack.c.h.b16 %v1200
      %v1251 = vunpack.c.l.b16 %v1201
      %v1252 = vunpack.c.h.b16 %v1201
      %v1253 = vunpack.c.l.b16 %v1202
      %v1254 = vunpack.c.h.b16 %v1202
      %v1255 = vunpack.c.l.b16 %v1203
      %v1256 = vunpack.c.h.b16 %v1203
      %v1257 = vunpack.c.l.b16 %v1204
      %v1258 = vunpack.c.h.b16 %v1204
      %v1259 = vunpack.c.l.b16 %v1205
      %v1260 = vunpack.c.h.b16 %v1205
      %v1261 = vunpack.c.l.b16 %v1206
      %v1262 = vunpack.c.h.b16 %v1206
      %v1263 = vpack.c.b16 %v1233, %v1231
      %v1264 = vpack.c.b16 %v1234, %v1232
      %v1265 = vpack.c.b16 %v1237, %v1235
      %v1266 = vpack.c.b16 %v1238, %v1236
      %v1267 = vpack.c.b16 %v1241, %v1239
      %v1268 = vpack.c.b16 %v1242, %v1240
      %v1269 = vpack.c.b16 %v1245, %v1243
      %v1270 = vpack.c.b16 %v1246, %v1244
      %v1271 = vpack.c.b16 %v1249, %v1247
      %v1272 = vpack.c.b16 %v1250, %v1248
      %v1273 = vpack.c.b16 %v1253, %v1251
      %v1274 = vpack.c.b16 %v1254, %v1252
      %v1275 = vpack.c.b16 %v1257, %v1255
      %v1276 = vpack.c.b16 %v1258, %v1256
      %v1277 = vpack.c.b16 %v1261, %v1259
      %v1278 = vpack.c.b16 %v1262, %v1260
      %1295 = vmatprep.subr.bf16.mxu0 %v1278
      %1296 = vmatpush1.bf16.msra.mxu0 %v1277
      %1297 = vmatprep.subr.bf16.mxu0 %v1276
      %1298 = vmatpush1.bf16.msra.mxu0 %v1275
      %1299 = vmatprep.subr.bf16.mxu0 %v1274
      %1300 = vmatpush1.bf16.msra.mxu0 %v1273
      %1301 = vmatprep.subr.bf16.mxu0 %v1272
      %1302 = vmatpush1.bf16.msra.mxu0 %v1271
      %1303 = vmatprep.subr.bf16.mxu0 %v1270
      %1304 = vmatpush1.bf16.msra.mxu0 %v1269
      %1305 = vmatprep.subr.bf16.mxu0 %v1268
      %1306 = vmatpush1.bf16.msra.mxu0 %v1267
      %1307 = vmatprep.subr.bf16.mxu0 %v1266
      %1308 = vmatpush1.bf16.msra.mxu0 %v1265
      %1309 = vmatprep.subr.bf16.mxu0 %v1264
      %1310 = vmatpush1.bf16.msra.mxu0 %v1263
      %1311 = vmatprep.subr.bf16.mxu0 0
      %1312 = vmatpush2.bf16.msra.mxu0 0
      %1313 = vmatprep.subr.bf16.mxu0 0
      %1314 = vmatpush2.bf16.msra.mxu0 0
      %1315 = vmatprep.subr.bf16.mxu0 0
      %1316 = vmatpush2.bf16.msra.mxu0 0
      %1317 = vmatprep.subr.bf16.mxu0 0
      %1318 = vmatpush2.bf16.msra.mxu0 0
      %1319 = vmatprep.subr.bf16.mxu0 0
      %1320 = vmatpush2.bf16.msra.mxu0 0
      %1321 = vmatprep.subr.bf16.mxu0 0
      %1322 = vmatpush2.bf16.msra.mxu0 0
      %1323 = vmatprep.subr.bf16.mxu0 0
      %1324 = vmatpush2.bf16.msra.mxu0 0
      %1325 = vmatprep.subr.bf16.mxu0 0
      %1326 = vmatpush2.bf16.msra.mxu0 0
      %1327 = vmatprep.mubr.bf16.mxu0 0
      %1328 = vmatmul.mubr.bf16.gmra.mxu0 %v1183
      %v1329 = vpop.f32.mrf.mxu0
      %v1330 = vadd.f32 %v1210, %v1329
      %v1331 = vpop.f32.mrf.mxu0
      %v1332 = vadd.f32 %v1214, %v1331
      %v1333 = vpop.f32.mrf.mxu0
      %v1334 = vadd.f32 %v1210, %v1333
      %v1335 = vpop.f32.mrf.mxu0
      %v1336 = vadd.f32 %v1214, %v1335
      %1337 = vmatprep.mubr.bf16.mxu0 0
      %1338 = vmatmul.mubr.bf16.gmra.mxu0 %v1184
      %v1339 = vpop.f32.mrf.mxu0
      %v1340 = vadd.f32 %v1210, %v1339
      %v1341 = vpop.f32.mrf.mxu0
      %v1342 = vadd.f32 %v1214, %v1341
      %v1343 = vpop.f32.mrf.mxu0
      %v1344 = vadd.f32 %v1210, %v1343
      %v1345 = vpop.f32.mrf.mxu0
      %v1346 = vadd.f32 %v1214, %v1345
      %1347 = vmatprep.mubr.bf16.mxu0 0
      %1348 = vmatmul.mubr.bf16.gmra.mxu0 %v1185
      %v1349 = vpop.f32.mrf.mxu0
      %v1350 = vadd.f32 %v1210, %v1349
      %v1351 = vpop.f32.mrf.mxu0
      %v1352 = vadd.f32 %v1214, %v1351
      %v1353 = vpop.f32.mrf.mxu0
      %v1354 = vadd.f32 %v1210, %v1353
      %v1355 = vpop.f32.mrf.mxu0
      %v1356 = vadd.f32 %v1214, %v1355
      %1357 = vmatprep.mubr.bf16.mxu0 0
      %1358 = vmatmul.mubr.bf16.gmra.mxu0 %v1186
      %v1359 = vpop.f32.mrf.mxu0
      %v1360 = vadd.f32 %v1210, %v1359
      %v1361 = vpop.f32.mrf.mxu0
      %v1362 = vadd.f32 %v1214, %v1361
      %v1363 = vpop.f32.mrf.mxu0
      %v1364 = vadd.f32 %v1210, %v1363
      %v1365 = vpop.f32.mrf.mxu0
      %v1366 = vadd.f32 %v1214, %v1365
      %1367 = vmatprep.mubr.bf16.mxu0 0
      %1368 = vmatmul.mubr.bf16.gmra.mxu0 %v1187
      %v1369 = vpop.f32.mrf.mxu0
      %v1370 = vadd.f32 %v1210, %v1369
      %v1371 = vpop.f32.mrf.mxu0
      %v1372 = vadd.f32 %v1214, %v1371
      %v1373 = vpop.f32.mrf.mxu0
      %v1374 = vadd.f32 %v1210, %v1373
      %v1375 = vpop.f32.mrf.mxu0
      %v1376 = vadd.f32 %v1214, %v1375
      %1377 = vmatprep.mubr.bf16.mxu0 0
      %1378 = vmatmul.mubr.bf16.gmra.mxu0 %v1188
      %v1379 = vpop.f32.mrf.mxu0
      %v1380 = vadd.f32 %v1210, %v1379
      %v1381 = vpop.f32.mrf.mxu0
      %v1382 = vadd.f32 %v1214, %v1381
      %v1383 = vpop.f32.mrf.mxu0
      %v1384 = vadd.f32 %v1210, %v1383
      %v1385 = vpop.f32.mrf.mxu0
      %v1386 = vadd.f32 %v1214, %v1385
      %1387 = vmatprep.mubr.bf16.mxu0 0
      %1388 = vmatmul.mubr.bf16.gmra.mxu0 %v1189
      %v1389 = vpop.f32.mrf.mxu0
      %v1390 = vadd.f32 %v1210, %v1389
      %v1391 = vpop.f32.mrf.mxu0
      %v1392 = vadd.f32 %v1214, %v1391
      %v1393 = vpop.f32.mrf.mxu0
      %v1394 = vadd.f32 %v1210, %v1393
      %v1395 = vpop.f32.mrf.mxu0
      %v1396 = vadd.f32 %v1214, %v1395
      %1397 = vmatprep.mubr.bf16.mxu0 0
      %1398 = vmatmul.mubr.bf16.gmra.mxu0 %v1190
      %v1399 = vpop.f32.mrf.mxu0
      %v1400 = vadd.f32 %v1210, %v1399
      %v1401 = vpop.f32.mrf.mxu0
      %v1402 = vadd.f32 %v1214, %v1401
      %v1403 = vpop.f32.mrf.mxu0
      %v1404 = vadd.f32 %v1210, %v1403
      %v1405 = vpop.f32.mrf.mxu0
      %v1406 = vadd.f32 %v1214, %v1405
      %1407 = vdwg.mxu0
      %vm1408 = vcmp.gt.f32.partialorder %v1330, 0.0
      %vm1409 = vcmp.gt.f32.partialorder %v1332, 0.0
      %vm1410 = vcmp.gt.f32.partialorder %v1334, 0.0
      %vm1411 = vcmp.gt.f32.partialorder %v1336, 0.0
      %vm1412 = vcmp.gt.f32.partialorder %v1340, 0.0
      %vm1413 = vcmp.gt.f32.partialorder %v1342, 0.0
      %vm1414 = vcmp.gt.f32.partialorder %v1344, 0.0
      %vm1415 = vcmp.gt.f32.partialorder %v1346, 0.0
      %vm1416 = vcmp.gt.f32.partialorder %v1350, 0.0
      %vm1417 = vcmp.gt.f32.partialorder %v1352, 0.0
      %vm1418 = vcmp.gt.f32.partialorder %v1354, 0.0
      %vm1419 = vcmp.gt.f32.partialorder %v1356, 0.0
      %vm1420 = vcmp.gt.f32.partialorder %v1360, 0.0
      %vm1421 = vcmp.gt.f32.partialorder %v1362, 0.0
      %vm1422 = vcmp.gt.f32.partialorder %v1364, 0.0
      %vm1423 = vcmp.gt.f32.partialorder %v1366, 0.0
      %vm1424 = vcmp.gt.f32.partialorder %v1370, 0.0
      %vm1425 = vcmp.gt.f32.partialorder %v1372, 0.0
      %vm1426 = vcmp.gt.f32.partialorder %v1374, 0.0
      %vm1427 = vcmp.gt.f32.partialorder %v1376, 0.0
      %vm1428 = vcmp.gt.f32.partialorder %v1380, 0.0
      %vm1429 = vcmp.gt.f32.partialorder %v1382, 0.0
      %vm1430 = vcmp.gt.f32.partialorder %v1384, 0.0
      %vm1431 = vcmp.gt.f32.partialorder %v1386, 0.0
      %vm1432 = vcmp.gt.f32.partialorder %v1390, 0.0
      %vm1433 = vcmp.gt.f32.partialorder %v1392, 0.0
      %vm1434 = vcmp.gt.f32.partialorder %v1394, 0.0
      %vm1435 = vcmp.gt.f32.partialorder %v1396, 0.0
      %vm1436 = vcmp.gt.f32.partialorder %v1400, 0.0
      %vm1437 = vcmp.gt.f32.partialorder %v1402, 0.0
      %vm1438 = vcmp.gt.f32.partialorder %v1404, 0.0
      %vm1439 = vcmp.gt.f32.partialorder %v1406, 0.0
      %v1440 = vmul.f32 %v1330, 1.442695
      %v1441 = vpow.pop %v1440
      %v1442 = vmul.f32 %v1332, 1.442695
      %v1443 = vpow.pop %v1442
      %v1444 = vmul.f32 %v1334, 1.442695
      %v1445 = vpow.pop %v1444
      %v1446 = vmul.f32 %v1336, 1.442695
      %v1447 = vpow.pop %v1446
      %v1448 = vmul.f32 %v1340, 1.442695
      %v1449 = vpow.pop %v1448
      %v1450 = vmul.f32 %v1342, 1.442695
      %v1451 = vpow.pop %v1450
      %v1452 = vmul.f32 %v1344, 1.442695
      %v1453 = vpow.pop %v1452
      %v1454 = vmul.f32 %v1346, 1.442695
      %v1455 = vpow.pop %v1454
      %v1456 = vmul.f32 %v1350, 1.442695
      %v1457 = vpow.pop %v1456
      %v1458 = vmul.f32 %v1352, 1.442695
      %v1459 = vpow.pop %v1458
      %v1460 = vmul.f32 %v1354, 1.442695
      %v1461 = vpow.pop %v1460
      %v1462 = vmul.f32 %v1356, 1.442695
      %v1463 = vpow.pop %v1462
      %v1464 = vmul.f32 %v1360, 1.442695
      %v1465 = vpow.pop %v1464
      %v1466 = vmul.f32 %v1362, 1.442695
      %v1467 = vpow.pop %v1466
      %v1468 = vmul.f32 %v1364, 1.442695
      %v1469 = vpow.pop %v1468
      %v1470 = vmul.f32 %v1366, 1.442695
      %v1471 = vpow.pop %v1470
      %v1472 = vmul.f32 %v1370, 1.442695
      %v1473 = vpow.pop %v1472
      %v1474 = vmul.f32 %v1372, 1.442695
      %v1475 = vpow.pop %v1474
      %v1476 = vmul.f32 %v1374, 1.442695
      %v1477 = vpow.pop %v1476
      %v1478 = vmul.f32 %v1376, 1.442695
      %v1479 = vpow.pop %v1478
      %v1480 = vmul.f32 %v1380, 1.442695
      %v1481 = vpow.pop %v1480
      %v1482 = vmul.f32 %v1382, 1.442695
      %v1483 = vpow.pop %v1482
      %v1484 = vmul.f32 %v1384, 1.442695
      %v1485 = vpow.pop %v1484
      %v1486 = vmul.f32 %v1386, 1.442695
      %v1487 = vpow.pop %v1486
      %v1488 = vmul.f32 %v1390, 1.442695
      %v1489 = vpow.pop %v1488
      %v1490 = vmul.f32 %v1392, 1.442695
      %v1491 = vpow.pop %v1490
      %v1492 = vmul.f32 %v1394, 1.442695
      %v1493 = vpow.pop %v1492
      %v1494 = vmul.f32 %v1396, 1.442695
      %v1495 = vpow.pop %v1494
      %v1496 = vmul.f32 %v1400, 1.442695
      %v1497 = vpow.pop %v1496
      %v1498 = vmul.f32 %v1402, 1.442695
      %v1499 = vpow.pop %v1498
      %v1500 = vmul.f32 %v1404, 1.442695
      %v1501 = vpow.pop %v1500
      %v1502 = vmul.f32 %v1406, 1.442695
      %v1503 = vpow.pop %v1502
      %v1504 = vsub.f32 %v1441, 1.0
      %v1505 = vsub.f32 %v1443, 1.0
      %v1506 = vsub.f32 %v1445, 1.0
      %v1507 = vsub.f32 %v1447, 1.0
      %v1508 = vsub.f32 %v1449, 1.0
      %v1509 = vsub.f32 %v1451, 1.0
      %v1510 = vsub.f32 %v1453, 1.0
      %v1511 = vsub.f32 %v1455, 1.0
      %v1512 = vsub.f32 %v1457, 1.0
      %v1513 = vsub.f32 %v1459, 1.0
      %v1514 = vsub.f32 %v1461, 1.0
      %v1515 = vsub.f32 %v1463, 1.0
      %v1516 = vsub.f32 %v1465, 1.0
      %v1517 = vsub.f32 %v1467, 1.0
      %v1518 = vsub.f32 %v1469, 1.0
      %v1519 = vsub.f32 %v1471, 1.0
      %v1520 = vsub.f32 %v1473, 1.0
      %v1521 = vsub.f32 %v1475, 1.0
      %v1522 = vsub.f32 %v1477, 1.0
      %v1523 = vsub.f32 %v1479, 1.0
      %v1524 = vsub.f32 %v1481, 1.0
      %v1525 = vsub.f32 %v1483, 1.0
      %v1526 = vsub.f32 %v1485, 1.0
      %v1527 = vsub.f32 %v1487, 1.0
      %v1528 = vsub.f32 %v1489, 1.0
      %v1529 = vsub.f32 %v1491, 1.0
      %v1530 = vsub.f32 %v1493, 1.0
      %v1531 = vsub.f32 %v1495, 1.0
      %v1532 = vsub.f32 %v1497, 1.0
      %v1533 = vsub.f32 %v1499, 1.0
      %v1534 = vsub.f32 %v1501, 1.0
      %v1535 = vsub.f32 %v1503, 1.0
      %v1536 = vsel %vm1408, %v1330, %v1504
      %v1537 = vsel %vm1409, %v1332, %v1505
      %v1538 = vsel %vm1410, %v1334, %v1506
      %v1539 = vsel %vm1411, %v1336, %v1507
      %v1540 = vsel %vm1412, %v1340, %v1508
      %v1541 = vsel %vm1413, %v1342, %v1509
      %v1542 = vsel %vm1414, %v1344, %v1510
      %v1543 = vsel %vm1415, %v1346, %v1511
      %v1544 = vsel %vm1416, %v1350, %v1512
      %v1545 = vsel %vm1417, %v1352, %v1513
      %v1546 = vsel %vm1418, %v1354, %v1514
      %v1547 = vsel %vm1419, %v1356, %v1515
      %v1548 = vsel %vm1420, %v1360, %v1516
      %v1549 = vsel %vm1421, %v1362, %v1517
      %v1550 = vsel %vm1422, %v1364, %v1518
      %v1551 = vsel %vm1423, %v1366, %v1519
      %v1552 = vsel %vm1424, %v1370, %v1520
      %v1553 = vsel %vm1425, %v1372, %v1521
      %v1554 = vsel %vm1426, %v1374, %v1522
      %v1555 = vsel %vm1427, %v1376, %v1523
      %v1556 = vsel %vm1428, %v1380, %v1524
      %v1557 = vsel %vm1429, %v1382, %v1525
      %v1558 = vsel %vm1430, %v1384, %v1526
      %v1559 = vsel %vm1431, %v1386, %v1527
      %v1560 = vsel %vm1432, %v1390, %v1528
      %v1561 = vsel %vm1433, %v1392, %v1529
      %v1562 = vsel %vm1434, %v1394, %v1530
      %v1563 = vsel %vm1435, %v1396, %v1531
      %v1564 = vsel %vm1436, %v1400, %v1532
      %v1565 = vsel %vm1437, %v1402, %v1533
      %v1566 = vsel %vm1438, %v1404, %v1534
      %v1567 = vsel %vm1439, %v1406, %v1535
      %1568 = vst [vmem:[%s371] sm:$0xff] %v1536
      %vm1569 = vcmask 261120
      %1570 = vst.msk [vmem:[%s371 + $0x8] sm:$0xff] %vm1569, %v1537
      %1571 = vst [vmem:[%s371 + $0x10] sm:$0xff] %v1538
      %1572 = vst.msk [vmem:[%s371 + $0x18] sm:$0xff] %vm1569, %v1539
      %1573 = vst [vmem:[%s371 + $0x20] sm:$0xff] %v1540
      %1574 = vst.msk [vmem:[%s371 + $0x28] sm:$0xff] %vm1569, %v1541
      %1575 = vst [vmem:[%s371 + $0x30] sm:$0xff] %v1542
      %1576 = vst.msk [vmem:[%s371 + $0x38] sm:$0xff] %vm1569, %v1543
      %1577 = vst [vmem:[%s371 + $0x40] sm:$0xff] %v1544
      %1578 = vst.msk [vmem:[%s371 + $0x48] sm:$0xff] %vm1569, %v1545
      %1579 = vst [vmem:[%s371 + $0x50] sm:$0xff] %v1546
      %1580 = vst.msk [vmem:[%s371 + $0x58] sm:$0xff] %vm1569, %v1547
      %1581 = vst [vmem:[%s371 + $0x60] sm:$0xff] %v1548
      %1582 = vst.msk [vmem:[%s371 + $0x68] sm:$0xff] %vm1569, %v1549
      %1583 = vst [vmem:[%s371 + $0x70] sm:$0xff] %v1550
      %1584 = vst.msk [vmem:[%s371 + $0x78] sm:$0xff] %vm1569, %v1551
      %1585 = vst [vmem:[%s371 + $0x80] sm:$0xff] %v1552
      %1586 = vst.msk [vmem:[%s371 + $0x88] sm:$0xff] %vm1569, %v1553
      %1587 = vst [vmem:[%s371 + $0x90] sm:$0xff] %v1554
      %1588 = vst.msk [vmem:[%s371 + $0x98] sm:$0xff] %vm1569, %v1555
      %1589 = vst [vmem:[%s371 + $0xa0] sm:$0xff] %v1556
      %1590 = vst.msk [vmem:[%s371 + $0xa8] sm:$0xff] %vm1569, %v1557
      %1591 = vst [vmem:[%s371 + $0xb0] sm:$0xff] %v1558
      %1592 = vst.msk [vmem:[%s371 + $0xb8] sm:$0xff] %vm1569, %v1559
      %1593 = vst [vmem:[%s371 + $0xc0] sm:$0xff] %v1560
      %1594 = vst.msk [vmem:[%s371 + $0xc8] sm:$0xff] %vm1569, %v1561
      %1595 = vst [vmem:[%s371 + $0xd0] sm:$0xff] %v1562
      %1596 = vst.msk [vmem:[%s371 + $0xd8] sm:$0xff] %vm1569, %v1563
      %1597 = vst [vmem:[%s371 + $0xe0] sm:$0xff] %v1564
      %1598 = vst.msk [vmem:[%s371 + $0xe8] sm:$0xff] %vm1569, %v1565
      %1599 = vst [vmem:[%s371 + $0xf0] sm:$0xff] %v1566
      %1600 = vst.msk [vmem:[%s371 + $0xf8] sm:$0xff] %vm1569, %v1567
      %v1601 = vpack.c.bf16 %v1538, %v1536
      %v1602 = vpack.c.bf16 %v1539, %v1537
      %v1603 = vpack.c.bf16 %v1542, %v1540
      %v1604 = vpack.c.bf16 %v1543, %v1541
      %v1605 = vpack.c.bf16 %v1546, %v1544
      %v1606 = vpack.c.bf16 %v1547, %v1545
      %v1607 = vpack.c.bf16 %v1550, %v1548
      %v1608 = vpack.c.bf16 %v1551, %v1549
      %v1609 = vpack.c.bf16 %v1554, %v1552
      %v1610 = vpack.c.bf16 %v1555, %v1553
      %v1611 = vpack.c.bf16 %v1558, %v1556
      %v1612 = vpack.c.bf16 %v1559, %v1557
      %v1613 = vpack.c.bf16 %v1562, %v1560
      %v1614 = vpack.c.bf16 %v1563, %v1561
      %v1615 = vpack.c.bf16 %v1566, %v1564
      %v1616 = vpack.c.bf16 %v1567, %v1565
      %v1617 = vld [vmem:[%s5] sm:$0xff]
      %v1618 = vld [vmem:[%s5 + $0x8] sm:$0xff]
      %v1619 = vld [vmem:[%s5 + $0x10] sm:$0xff]
      %v1620 = vld [vmem:[%s5 + $0x18] sm:$0xff]
      %v1621 = vld [vmem:[%s5 + $0x20] sm:$0xff]
      %v1622 = vld [vmem:[%s5 + $0x28] sm:$0xff]
      %v1623 = vld [vmem:[%s5 + $0x30] sm:$0xff]
      %v1624 = vld [vmem:[%s5 + $0x38] sm:$0xff]
      %v1625 = vld [vmem:[%s5 + $0x40] sm:$0xff]
      %v1626 = vld [vmem:[%s5 + $0x48] sm:$0xff]
      %v1627 = vld [vmem:[%s5 + $0x50] sm:$0xff]
      %v1628 = vld [vmem:[%s5 + $0x58] sm:$0xff]
      %v1629 = vld [vmem:[%s5 + $0x60] sm:$0xff]
      %v1630 = vld [vmem:[%s5 + $0x68] sm:$0xff]
      %v1631 = vld [vmem:[%s5 + $0x70] sm:$0xff]
      %v1632 = vld [vmem:[%s5 + $0x78] sm:$0xff]
      %v1633 = vld [vmem:[%s5 + $0x80] sm:$0xff]
      %v1634 = vld [vmem:[%s5 + $0x88] sm:$0xff]
      %v1635 = vld [vmem:[%s5 + $0x90] sm:$0xff]
      %v1636 = vld [vmem:[%s5 + $0x98] sm:$0xff]
      %v1637 = vlaneseq
      %v1638 = vshrl.u32 %v1637, 7
      %v1639 = vsub.s32 4, %v1638
      %v1640 = vrot.slane %v380, %v1639
      %v1641 = vlaneseq
      %v1642 = vshrl.u32 %v1641, 7
      %v1643 = vsub.s32 4, %v1642
      %v1644 = vrot.slane %v381, %v1643
      %v1665 = vunpack.c.l.b16 %v1617
      %v1666 = vunpack.c.h.b16 %v1617
      %v1667 = vunpack.c.l.b16 %v1618
      %v1668 = vunpack.c.h.b16 %v1618
      %v1669 = vunpack.c.l.b16 %v1619
      %v1670 = vunpack.c.h.b16 %v1619
      %v1671 = vunpack.c.l.b16 %v1620
      %v1672 = vunpack.c.h.b16 %v1620
      %v1673 = vunpack.c.l.b16 %v1621
      %v1674 = vunpack.c.h.b16 %v1621
      %v1675 = vunpack.c.l.b16 %v1622
      %v1676 = vunpack.c.h.b16 %v1622
      %v1677 = vunpack.c.l.b16 %v1623
      %v1678 = vunpack.c.h.b16 %v1623
      %v1679 = vunpack.c.l.b16 %v1624
      %v1680 = vunpack.c.h.b16 %v1624
      %v1681 = vunpack.c.l.b16 %v1625
      %v1682 = vunpack.c.h.b16 %v1625
      %v1683 = vunpack.c.l.b16 %v1626
      %v1684 = vunpack.c.h.b16 %v1626
      %v1685 = vunpack.c.l.b16 %v1627
      %v1686 = vunpack.c.h.b16 %v1627
      %v1687 = vunpack.c.l.b16 %v1628
      %v1688 = vunpack.c.h.b16 %v1628
      %v1689 = vunpack.c.l.b16 %v1629
      %v1690 = vunpack.c.h.b16 %v1629
      %v1691 = vunpack.c.l.b16 %v1630
      %v1692 = vunpack.c.h.b16 %v1630
      %v1693 = vunpack.c.l.b16 %v1631
      %v1694 = vunpack.c.h.b16 %v1631
      %v1695 = vunpack.c.l.b16 %v1632
      %v1696 = vunpack.c.h.b16 %v1632
      %v1697 = vunpack.c.l.b16 %v1633
      %v1698 = vunpack.c.h.b16 %v1633
      %v1699 = vunpack.c.l.b16 %v1634
      %v1700 = vunpack.c.h.b16 %v1634
      %v1701 = vunpack.c.l.b16 %v1635
      %v1702 = vunpack.c.h.b16 %v1635
      %v1703 = vunpack.c.l.b16 %v1636
      %v1704 = vunpack.c.h.b16 %v1636
      %v1705 = vpack.c.b16 %v1667, %v1665
      %v1706 = vpack.c.b16 %v1668, %v1666
      %v1707 = vpack.c.b16 %v1671, %v1669
      %v1708 = vpack.c.b16 %v1672, %v1670
      %v1709 = vpack.c.b16 %v1675, %v1673
      %v1710 = vpack.c.b16 %v1676, %v1674
      %v1711 = vpack.c.b16 %v1679, %v1677
      %v1712 = vpack.c.b16 %v1680, %v1678
      %v1713 = vpack.c.b16 %v1683, %v1681
      %v1714 = vpack.c.b16 %v1684, %v1682
      %v1715 = vpack.c.b16 %v1687, %v1685
      %v1716 = vpack.c.b16 %v1688, %v1686
      %v1717 = vpack.c.b16 %v1691, %v1689
      %v1718 = vpack.c.b16 %v1692, %v1690
      %v1719 = vpack.c.b16 %v1695, %v1693
      %v1720 = vpack.c.b16 %v1696, %v1694
      %v1721 = vpack.c.b16 %v1699, %v1697
      %v1722 = vpack.c.b16 %v1700, %v1698
      %v1723 = vpack.c.b16 %v1703, %v1701
      %v1724 = vpack.c.b16 %v1704, %v1702
      %v1746 = vsel %vm1569, %v1602, 0
      %v1749 = vsel %vm1569, %v1604, 0
      %v1752 = vsel %vm1569, %v1606, 0
      %v1755 = vsel %vm1569, %v1608, 0
      %v1758 = vsel %vm1569, %v1610, 0
      %v1761 = vsel %vm1569, %v1612, 0
      %v1764 = vsel %vm1569, %v1614, 0
      %v1767 = vsel %vm1569, %v1616, 0
      %1769 = vmatprep.subr.bf16.mxu0 %v1720
      %1770 = vmatpush1.bf16.msra.mxu0 %v1719
      %1771 = vmatprep.subr.bf16.mxu0 %v1718
      %1772 = vmatpush1.bf16.msra.mxu0 %v1717
      %1773 = vmatprep.subr.bf16.mxu0 %v1716
      %1774 = vmatpush1.bf16.msra.mxu0 %v1715
      %1775 = vmatprep.subr.bf16.mxu0 %v1714
      %1776 = vmatpush1.bf16.msra.mxu0 %v1713
      %1777 = vmatprep.subr.bf16.mxu0 %v1712
      %1778 = vmatpush1.bf16.msra.mxu0 %v1711
      %1779 = vmatprep.subr.bf16.mxu0 %v1710
      %1780 = vmatpush1.bf16.msra.mxu0 %v1709
      %1781 = vmatprep.subr.bf16.mxu0 %v1708
      %1782 = vmatpush1.bf16.msra.mxu0 %v1707
      %1783 = vmatprep.subr.bf16.mxu0 %v1706
      %1784 = vmatpush1.bf16.msra.mxu0 %v1705
      %1785 = vmatprep.subr.bf16.mxu0 0
      %1786 = vmatpush2.bf16.msra.mxu0 0
      %1787 = vmatprep.subr.bf16.mxu0 0
      %1788 = vmatpush2.bf16.msra.mxu0 0
      %1789 = vmatprep.subr.bf16.mxu0 0
      %1790 = vmatpush2.bf16.msra.mxu0 0
      %1791 = vmatprep.subr.bf16.mxu0 0
      %1792 = vmatpush2.bf16.msra.mxu0 0
      %1793 = vmatprep.subr.bf16.mxu0 0
      %1794 = vmatpush2.bf16.msra.mxu0 0
      %1795 = vmatprep.subr.bf16.mxu0 0
      %1796 = vmatpush2.bf16.msra.mxu0 0
      %1797 = vmatprep.subr.bf16.mxu0 %v1724
      %1798 = vmatpush2.bf16.msra.mxu0 %v1723
      %1799 = vmatprep.subr.bf16.mxu0 %v1722
      %1800 = vmatpush2.bf16.msra.mxu0 %v1721
      %1801 = vmatprep.mubr.bf16.mxu0 %v1746
      %1802 = vmatmul.mubr.bf16.gmra.mxu0 %v1601
      %v1803 = vpop.f32.mrf.mxu0
      %v1804 = vadd.f32 %v1640, %v1803
      %v1805 = vpop.f32.mrf.mxu0
      %v1806 = vadd.f32 %v1644, %v1805
      %v1807 = vpop.f32.mrf.mxu0
      %v1808 = vadd.f32 %v1640, %v1807
      %v1809 = vpop.f32.mrf.mxu0
      %v1810 = vadd.f32 %v1644, %v1809
      %1811 = vmatprep.mubr.bf16.mxu0 %v1749
      %1812 = vmatmul.mubr.bf16.gmra.mxu0 %v1603
      %v1813 = vpop.f32.mrf.mxu0
      %v1814 = vadd.f32 %v1640, %v1813
      %v1815 = vpop.f32.mrf.mxu0
      %v1816 = vadd.f32 %v1644, %v1815
      %v1817 = vpop.f32.mrf.mxu0
      %v1818 = vadd.f32 %v1640, %v1817
      %v1819 = vpop.f32.mrf.mxu0
      %v1820 = vadd.f32 %v1644, %v1819
      %1821 = vmatprep.mubr.bf16.mxu0 %v1752
      %1822 = vmatmul.mubr.bf16.gmra.mxu0 %v1605
      %v1823 = vpop.f32.mrf.mxu0
      %v1824 = vadd.f32 %v1640, %v1823
      %v1825 = vpop.f32.mrf.mxu0
      %v1826 = vadd.f32 %v1644, %v1825
      %v1827 = vpop.f32.mrf.mxu0
      %v1828 = vadd.f32 %v1640, %v1827
      %v1829 = vpop.f32.mrf.mxu0
      %v1830 = vadd.f32 %v1644, %v1829
      %1831 = vmatprep.mubr.bf16.mxu0 %v1755
      %1832 = vmatmul.mubr.bf16.gmra.mxu0 %v1607
      %v1833 = vpop.f32.mrf.mxu0
      %v1834 = vadd.f32 %v1640, %v1833
      %v1835 = vpop.f32.mrf.mxu0
      %v1836 = vadd.f32 %v1644, %v1835
      %v1837 = vpop.f32.mrf.mxu0
      %v1838 = vadd.f32 %v1640, %v1837
      %v1839 = vpop.f32.mrf.mxu0
      %v1840 = vadd.f32 %v1644, %v1839
      %1841 = vmatprep.mubr.bf16.mxu0 %v1758
      %1842 = vmatmul.mubr.bf16.gmra.mxu0 %v1609
      %v1843 = vpop.f32.mrf.mxu0
      %v1844 = vadd.f32 %v1640, %v1843
      %v1845 = vpop.f32.mrf.mxu0
      %v1846 = vadd.f32 %v1644, %v1845
      %v1847 = vpop.f32.mrf.mxu0
      %v1848 = vadd.f32 %v1640, %v1847
      %v1849 = vpop.f32.mrf.mxu0
      %v1850 = vadd.f32 %v1644, %v1849
      %1851 = vmatprep.mubr.bf16.mxu0 %v1761
      %1852 = vmatmul.mubr.bf16.gmra.mxu0 %v1611
      %v1853 = vpop.f32.mrf.mxu0
      %v1854 = vadd.f32 %v1640, %v1853
      %v1855 = vpop.f32.mrf.mxu0
      %v1856 = vadd.f32 %v1644, %v1855
      %v1857 = vpop.f32.mrf.mxu0
      %v1858 = vadd.f32 %v1640, %v1857
      %v1859 = vpop.f32.mrf.mxu0
      %v1860 = vadd.f32 %v1644, %v1859
      %1861 = vmatprep.mubr.bf16.mxu0 %v1764
      %1862 = vmatmul.mubr.bf16.gmra.mxu0 %v1613
      %v1863 = vpop.f32.mrf.mxu0
      %v1864 = vadd.f32 %v1640, %v1863
      %v1865 = vpop.f32.mrf.mxu0
      %v1866 = vadd.f32 %v1644, %v1865
      %v1867 = vpop.f32.mrf.mxu0
      %v1868 = vadd.f32 %v1640, %v1867
      %v1869 = vpop.f32.mrf.mxu0
      %v1870 = vadd.f32 %v1644, %v1869
      %1871 = vmatprep.mubr.bf16.mxu0 %v1767
      %1872 = vmatmul.mubr.bf16.gmra.mxu0 %v1615
      %v1873 = vpop.f32.mrf.mxu0
      %v1874 = vadd.f32 %v1640, %v1873
      %v1875 = vpop.f32.mrf.mxu0
      %v1876 = vadd.f32 %v1644, %v1875
      %v1877 = vpop.f32.mrf.mxu0
      %v1878 = vadd.f32 %v1640, %v1877
      %v1879 = vpop.f32.mrf.mxu0
      %v1880 = vadd.f32 %v1644, %v1879
      %1881 = vdwg.mxu0
      %vm1882 = vcmp.gt.f32.partialorder %v1804, 0.0
      %vm1883 = vcmp.gt.f32.partialorder %v1806, 0.0
      %vm1884 = vcmp.gt.f32.partialorder %v1808, 0.0
      %vm1885 = vcmp.gt.f32.partialorder %v1810, 0.0
      %vm1886 = vcmp.gt.f32.partialorder %v1814, 0.0
      %vm1887 = vcmp.gt.f32.partialorder %v1816, 0.0
      %vm1888 = vcmp.gt.f32.partialorder %v1818, 0.0
      %vm1889 = vcmp.gt.f32.partialorder %v1820, 0.0
      %vm1890 = vcmp.gt.f32.partialorder %v1824, 0.0
      %vm1891 = vcmp.gt.f32.partialorder %v1826, 0.0
      %vm1892 = vcmp.gt.f32.partialorder %v1828, 0.0
      %vm1893 = vcmp.gt.f32.partialorder %v1830, 0.0
      %vm1894 = vcmp.gt.f32.partialorder %v1834, 0.0
      %vm1895 = vcmp.gt.f32.partialorder %v1836, 0.0
      %vm1896 = vcmp.gt.f32.partialorder %v1838, 0.0
      %vm1897 = vcmp.gt.f32.partialorder %v1840, 0.0
      %vm1898 = vcmp.gt.f32.partialorder %v1844, 0.0
      %vm1899 = vcmp.gt.f32.partialorder %v1846, 0.0
      %vm1900 = vcmp.gt.f32.partialorder %v1848, 0.0
      %vm1901 = vcmp.gt.f32.partialorder %v1850, 0.0
      %vm1902 = vcmp.gt.f32.partialorder %v1854, 0.0
      %vm1903 = vcmp.gt.f32.partialorder %v1856, 0.0
      %vm1904 = vcmp.gt.f32.partialorder %v1858, 0.0
      %vm1905 = vcmp.gt.f32.partialorder %v1860, 0.0
      %vm1906 = vcmp.gt.f32.partialorder %v1864, 0.0
      %vm1907 = vcmp.gt.f32.partialorder %v1866, 0.0
      %vm1908 = vcmp.gt.f32.partialorder %v1868, 0.0
      %vm1909 = vcmp.gt.f32.partialorder %v1870, 0.0
      %vm1910 = vcmp.gt.f32.partialorder %v1874, 0.0
      %vm1911 = vcmp.gt.f32.partialorder %v1876, 0.0
      %vm1912 = vcmp.gt.f32.partialorder %v1878, 0.0
      %vm1913 = vcmp.gt.f32.partialorder %v1880, 0.0
      %v1914 = vmul.f32 %v1804, 1.442695
      %v1915 = vpow.pop %v1914
      %v1916 = vmul.f32 %v1806, 1.442695
      %v1917 = vpow.pop %v1916
      %v1918 = vmul.f32 %v1808, 1.442695
      %v1919 = vpow.pop %v1918
      %v1920 = vmul.f32 %v1810, 1.442695
      %v1921 = vpow.pop %v1920
      %v1922 = vmul.f32 %v1814, 1.442695
      %v1923 = vpow.pop %v1922
      %v1924 = vmul.f32 %v1816, 1.442695
      %v1925 = vpow.pop %v1924
      %v1926 = vmul.f32 %v1818, 1.442695
      %v1927 = vpow.pop %v1926
      %v1928 = vmul.f32 %v1820, 1.442695
      %v1929 = vpow.pop %v1928
      %v1930 = vmul.f32 %v1824, 1.442695
      %v1931 = vpow.pop %v1930
      %v1932 = vmul.f32 %v1826, 1.442695
      %v1933 = vpow.pop %v1932
      %v1934 = vmul.f32 %v1828, 1.442695
      %v1935 = vpow.pop %v1934
      %v1936 = vmul.f32 %v1830, 1.442695
      %v1937 = vpow.pop %v1936
      %v1938 = vmul.f32 %v1834, 1.442695
      %v1939 = vpow.pop %v1938
      %v1940 = vmul.f32 %v1836, 1.442695
      %v1941 = vpow.pop %v1940
      %v1942 = vmul.f32 %v1838, 1.442695
      %v1943 = vpow.pop %v1942
      %v1944 = vmul.f32 %v1840, 1.442695
      %v1945 = vpow.pop %v1944
      %v1946 = vmul.f32 %v1844, 1.442695
      %v1947 = vpow.pop %v1946
      %v1948 = vmul.f32 %v1846, 1.442695
      %v1949 = vpow.pop %v1948
      %v1950 = vmul.f32 %v1848, 1.442695
      %v1951 = vpow.pop %v1950
      %v1952 = vmul.f32 %v1850, 1.442695
      %v1953 = vpow.pop %v1952
      %v1954 = vmul.f32 %v1854, 1.442695
      %v1955 = vpow.pop %v1954
      %v1956 = vmul.f32 %v1856, 1.442695
      %v1957 = vpow.pop %v1956
      %v1958 = vmul.f32 %v1858, 1.442695
      %v1959 = vpow.pop %v1958
      %v1960 = vmul.f32 %v1860, 1.442695
      %v1961 = vpow.pop %v1960
      %v1962 = vmul.f32 %v1864, 1.442695
      %v1963 = vpow.pop %v1962
      %v1964 = vmul.f32 %v1866, 1.442695
      %v1965 = vpow.pop %v1964
      %v1966 = vmul.f32 %v1868, 1.442695
      %v1967 = vpow.pop %v1966
      %v1968 = vmul.f32 %v1870, 1.442695
      %v1969 = vpow.pop %v1968
      %v1970 = vmul.f32 %v1874, 1.442695
      %v1971 = vpow.pop %v1970
      %v1972 = vmul.f32 %v1876, 1.442695
      %v1973 = vpow.pop %v1972
      %v1974 = vmul.f32 %v1878, 1.442695
      %v1975 = vpow.pop %v1974
      %v1976 = vmul.f32 %v1880, 1.442695
      %v1977 = vpow.pop %v1976
      %v1978 = vsub.f32 %v1915, 1.0
      %v1979 = vsub.f32 %v1917, 1.0
      %v1980 = vsub.f32 %v1919, 1.0
      %v1981 = vsub.f32 %v1921, 1.0
      %v1982 = vsub.f32 %v1923, 1.0
      %v1983 = vsub.f32 %v1925, 1.0
      %v1984 = vsub.f32 %v1927, 1.0
      %v1985 = vsub.f32 %v1929, 1.0
      %v1986 = vsub.f32 %v1931, 1.0
      %v1987 = vsub.f32 %v1933, 1.0
      %v1988 = vsub.f32 %v1935, 1.0
      %v1989 = vsub.f32 %v1937, 1.0
      %v1990 = vsub.f32 %v1939, 1.0
      %v1991 = vsub.f32 %v1941, 1.0
      %v1992 = vsub.f32 %v1943, 1.0
      %v1993 = vsub.f32 %v1945, 1.0
      %v1994 = vsub.f32 %v1947, 1.0
      %v1995 = vsub.f32 %v1949, 1.0
      %v1996 = vsub.f32 %v1951, 1.0
      %v1997 = vsub.f32 %v1953, 1.0
      %v1998 = vsub.f32 %v1955, 1.0
      %v1999 = vsub.f32 %v1957, 1.0
      %v2000 = vsub.f32 %v1959, 1.0
      %v2001 = vsub.f32 %v1961, 1.0
      %v2002 = vsub.f32 %v1963, 1.0
      %v2003 = vsub.f32 %v1965, 1.0
      %v2004 = vsub.f32 %v1967, 1.0
      %v2005 = vsub.f32 %v1969, 1.0
      %v2006 = vsub.f32 %v1971, 1.0
      %v2007 = vsub.f32 %v1973, 1.0
      %v2008 = vsub.f32 %v1975, 1.0
      %v2009 = vsub.f32 %v1977, 1.0
      %v2010 = vsel %vm1882, %v1804, %v1978
      %v2011 = vsel %vm1883, %v1806, %v1979
      %v2012 = vsel %vm1884, %v1808, %v1980
      %v2013 = vsel %vm1885, %v1810, %v1981
      %v2014 = vsel %vm1886, %v1814, %v1982
      %v2015 = vsel %vm1887, %v1816, %v1983
      %v2016 = vsel %vm1888, %v1818, %v1984
      %v2017 = vsel %vm1889, %v1820, %v1985
      %v2018 = vsel %vm1890, %v1824, %v1986
      %v2019 = vsel %vm1891, %v1826, %v1987
      %v2020 = vsel %vm1892, %v1828, %v1988
      %v2021 = vsel %vm1893, %v1830, %v1989
      %v2022 = vsel %vm1894, %v1834, %v1990
      %v2023 = vsel %vm1895, %v1836, %v1991
      %v2024 = vsel %vm1896, %v1838, %v1992
      %v2025 = vsel %vm1897, %v1840, %v1993
      %v2026 = vsel %vm1898, %v1844, %v1994
      %v2027 = vsel %vm1899, %v1846, %v1995
      %v2028 = vsel %vm1900, %v1848, %v1996
      %v2029 = vsel %vm1901, %v1850, %v1997
      %v2030 = vsel %vm1902, %v1854, %v1998
      %v2031 = vsel %vm1903, %v1856, %v1999
      %v2032 = vsel %vm1904, %v1858, %v2000
      %v2033 = vsel %vm1905, %v1860, %v2001
      %v2034 = vsel %vm1906, %v1864, %v2002
      %v2035 = vsel %vm1907, %v1866, %v2003
      %v2036 = vsel %vm1908, %v1868, %v2004
      %v2037 = vsel %vm1909, %v1870, %v2005
      %v2038 = vsel %vm1910, %v1874, %v2006
      %v2039 = vsel %vm1911, %v1876, %v2007
      %v2040 = vsel %vm1912, %v1878, %v2008
      %v2041 = vsel %vm1913, %v1880, %v2009
      %v2042 = vpack.c.bf16 %v2012, %v2010
      %v2043 = vpack.c.bf16 %v2013, %v2011
      %v2044 = vpack.c.bf16 %v2016, %v2014
      %v2045 = vpack.c.bf16 %v2017, %v2015
      %v2046 = vpack.c.bf16 %v2020, %v2018
      %v2047 = vpack.c.bf16 %v2021, %v2019
      %v2048 = vpack.c.bf16 %v2024, %v2022
      %v2049 = vpack.c.bf16 %v2025, %v2023
      %v2050 = vpack.c.bf16 %v2028, %v2026
      %v2051 = vpack.c.bf16 %v2029, %v2027
      %v2052 = vpack.c.bf16 %v2032, %v2030
      %v2053 = vpack.c.bf16 %v2033, %v2031
      %v2054 = vpack.c.bf16 %v2036, %v2034
      %v2055 = vpack.c.bf16 %v2037, %v2035
      %v2056 = vpack.c.bf16 %v2040, %v2038
      %v2057 = vpack.c.bf16 %v2041, %v2039
      %v2058 = vld [vmem:[%s6] sm:$0xf]
      %v2059 = vld [vmem:[%s6 + $0x4] sm:$0xf]
      %v2060 = vld [vmem:[%s6 + $0x8] sm:$0xf]
      %v2061 = vld [vmem:[%s6 + $0xc] sm:$0xf]
      %v2062 = vld [vmem:[%s6 + $0x10] sm:$0xf]
      %v2063 = vld [vmem:[%s6 + $0x14] sm:$0xf]
      %v2064 = vld [vmem:[%s6 + $0x18] sm:$0xf]
      %v2065 = vld [vmem:[%s6 + $0x1c] sm:$0xf]
      %v2066 = vld [vmem:[%s6 + $0x20] sm:$0xf]
      %v2067 = vld [vmem:[%s6 + $0x24] sm:$0xf]
      %v2068 = vld [vmem:[%s6 + $0x28] sm:$0xf]
      %v2069 = vld [vmem:[%s6 + $0x2c] sm:$0xf]
      %v2070 = vld [vmem:[%s6 + $0x30] sm:$0xf]
      %v2071 = vld [vmem:[%s6 + $0x34] sm:$0xf]
      %v2072 = vld [vmem:[%s6 + $0x38] sm:$0xf]
      %v2073 = vld [vmem:[%s6 + $0x3c] sm:$0xf]
      %v2074 = vld [vmem:[%s6 + $0x40] sm:$0xf]
      %v2075 = vld [vmem:[%s6 + $0x44] sm:$0xf]
      %v2076 = vld [vmem:[%s6 + $0x48] sm:$0xf]
      %v2077 = vld [vmem:[%s6 + $0x4c] sm:$0xf]
      %v2078 = vld [vmem:[%s6 + $0x50] sm:$0xf]
      %v2079 = vld [vmem:[%s6 + $0x54] sm:$0xf]
      %v2080 = vld [vmem:[%s6 + $0x58] sm:$0xf]
      %v2081 = vld [vmem:[%s6 + $0x5c] sm:$0xf]
      %v2082 = vld [vmem:[%s6 + $0x60] sm:$0xf]
      %v2083 = vld [vmem:[%s6 + $0x64] sm:$0xf]
      %v2084 = vld [vmem:[%s6 + $0x68] sm:$0xf]
      %v2085 = vld [vmem:[%s6 + $0x6c] sm:$0xf]
      %v2086 = vld [vmem:[%s6 + $0x70] sm:$0xf]
      %v2087 = vld [vmem:[%s6 + $0x74] sm:$0xf]
      %v2088 = vld [vmem:[%s6 + $0x78] sm:$0xf]
      %v2089 = vld [vmem:[%s6 + $0x7c] sm:$0xf]
      %v2090 = vlaneseq
      %v2091 = vshrl.u32 %v2090, 7
      %v2092 = vsub.s32 5, %v2091
      %v2093 = vrot.slane %v380, %v2092
      %v2126 = vunpack.c.l.b16 %v2058
      %v2127 = vunpack.c.l.b16 %v2059
      %v2128 = vunpack.c.l.b16 %v2060
      %v2129 = vunpack.c.l.b16 %v2061
      %v2130 = vunpack.c.l.b16 %v2062
      %v2131 = vunpack.c.l.b16 %v2063
      %v2132 = vunpack.c.l.b16 %v2064
      %v2133 = vunpack.c.l.b16 %v2065
      %v2134 = vunpack.c.l.b16 %v2066
      %v2135 = vunpack.c.l.b16 %v2067
      %v2136 = vunpack.c.l.b16 %v2068
      %v2137 = vunpack.c.l.b16 %v2069
      %v2138 = vunpack.c.l.b16 %v2070
      %v2139 = vunpack.c.l.b16 %v2071
      %v2140 = vunpack.c.l.b16 %v2072
      %v2141 = vunpack.c.l.b16 %v2073
      %v2142 = vunpack.c.l.b16 %v2074
      %v2143 = vunpack.c.l.b16 %v2075
      %v2144 = vunpack.c.l.b16 %v2076
      %v2145 = vunpack.c.l.b16 %v2077
      %v2146 = vunpack.c.l.b16 %v2078
      %v2147 = vunpack.c.l.b16 %v2079
      %v2148 = vunpack.c.l.b16 %v2080
      %v2149 = vunpack.c.l.b16 %v2081
      %v2150 = vunpack.c.l.b16 %v2082
      %v2151 = vunpack.c.l.b16 %v2083
      %v2152 = vunpack.c.l.b16 %v2084
      %v2153 = vunpack.c.l.b16 %v2085
      %v2154 = vunpack.c.l.b16 %v2086
      %v2155 = vunpack.c.l.b16 %v2087
      %v2156 = vunpack.c.l.b16 %v2088
      %v2157 = vunpack.c.l.b16 %v2089
      %v2158 = vpack.c.b16 %v2127, %v2126
      %v2159 = vpack.c.b16 %v2129, %v2128
      %v2160 = vpack.c.b16 %v2131, %v2130
      %v2161 = vpack.c.b16 %v2133, %v2132
      %v2162 = vpack.c.b16 %v2135, %v2134
      %v2163 = vpack.c.b16 %v2137, %v2136
      %v2164 = vpack.c.b16 %v2139, %v2138
      %v2165 = vpack.c.b16 %v2141, %v2140
      %v2166 = vpack.c.b16 %v2143, %v2142
      %v2167 = vpack.c.b16 %v2145, %v2144
      %v2168 = vpack.c.b16 %v2147, %v2146
      %v2169 = vpack.c.b16 %v2149, %v2148
      %v2170 = vpack.c.b16 %v2151, %v2150
      %v2171 = vpack.c.b16 %v2153, %v2152
      %v2172 = vpack.c.b16 %v2155, %v2154
      %v2173 = vpack.c.b16 %v2157, %v2156
      %2190 = vmatprep.subr.bf16.mxu0 0
      %2191 = vmatpush1.bf16.msra.mxu0 %v2165
      %2192 = vmatprep.subr.bf16.mxu0 0
      %2193 = vmatpush1.bf16.msra.mxu0 %v2164
      %2194 = vmatprep.subr.bf16.mxu0 0
      %2195 = vmatpush1.bf16.msra.mxu0 %v2163
      %2196 = vmatprep.subr.bf16.mxu0 0
      %2197 = vmatpush1.bf16.msra.mxu0 %v2162
      %2198 = vmatprep.subr.bf16.mxu0 0
      %2199 = vmatpush1.bf16.msra.mxu0 %v2161
      %2200 = vmatprep.subr.bf16.mxu0 0
      %2201 = vmatpush1.bf16.msra.mxu0 %v2160
      %2202 = vmatprep.subr.bf16.mxu0 0
      %2203 = vmatpush1.bf16.msra.mxu0 %v2159
      %2204 = vmatprep.subr.bf16.mxu0 0
      %2205 = vmatpush1.bf16.msra.mxu0 %v2158
      %2206 = vmatprep.subr.bf16.mxu0 0
      %2207 = vmatpush2.bf16.msra.mxu0 %v2173
      %2208 = vmatprep.subr.bf16.mxu0 0
      %2209 = vmatpush2.bf16.msra.mxu0 %v2172
      %2210 = vmatprep.subr.bf16.mxu0 0
      %2211 = vmatpush2.bf16.msra.mxu0 %v2171
      %2212 = vmatprep.subr.bf16.mxu0 0
      %2213 = vmatpush2.bf16.msra.mxu0 %v2170
      %2214 = vmatprep.subr.bf16.mxu0 0
      %2215 = vmatpush2.bf16.msra.mxu0 %v2169
      %2216 = vmatprep.subr.bf16.mxu0 0
      %2217 = vmatpush2.bf16.msra.mxu0 %v2168
      %2218 = vmatprep.subr.bf16.mxu0 0
      %2219 = vmatpush2.bf16.msra.mxu0 %v2167
      %2220 = vmatprep.subr.bf16.mxu0 0
      %2221 = vmatpush2.bf16.msra.mxu0 %v2166
      %2222 = vmatprep.mubr.bf16.mxu0 %v2043
      %2223 = vmatmul.mubr.bf16.gmra.mxu0 %v2042
      %v2224 = vpop.f32.mrf.mxu0
      %v2225 = vadd.f32 %v2093, %v2224
      %v2226 = vpop.f32.mrf.mxu0
      %v2227 = vpop.f32.mrf.mxu0
      %v2228 = vadd.f32 %v2093, %v2227
      %v2229 = vpop.f32.mrf.mxu0
      %2230 = vmatprep.mubr.bf16.mxu0 %v2045
      %2231 = vmatmul.mubr.bf16.gmra.mxu0 %v2044
      %v2232 = vpop.f32.mrf.mxu0
      %v2233 = vadd.f32 %v2093, %v2232
      %v2234 = vpop.f32.mrf.mxu0
      %v2235 = vpop.f32.mrf.mxu0
      %v2236 = vadd.f32 %v2093, %v2235
      %v2237 = vpop.f32.mrf.mxu0
      %2238 = vmatprep.mubr.bf16.mxu0 %v2047
      %2239 = vmatmul.mubr.bf16.gmra.mxu0 %v2046
      %v2240 = vpop.f32.mrf.mxu0
      %v2241 = vadd.f32 %v2093, %v2240
      %v2242 = vpop.f32.mrf.mxu0
      %v2243 = vpop.f32.mrf.mxu0
      %v2244 = vadd.f32 %v2093, %v2243
      %v2245 = vpop.f32.mrf.mxu0
      %2246 = vmatprep.mubr.bf16.mxu0 %v2049
      %2247 = vmatmul.mubr.bf16.gmra.mxu0 %v2048
      %v2248 = vpop.f32.mrf.mxu0
      %v2249 = vadd.f32 %v2093, %v2248
      %v2250 = vpop.f32.mrf.mxu0
      %v2251 = vpop.f32.mrf.mxu0
      %v2252 = vadd.f32 %v2093, %v2251
      %v2253 = vpop.f32.mrf.mxu0
      %2254 = vmatprep.mubr.bf16.mxu0 %v2051
      %2255 = vmatmul.mubr.bf16.gmra.mxu0 %v2050
      %v2256 = vpop.f32.mrf.mxu0
      %v2257 = vadd.f32 %v2093, %v2256
      %v2258 = vpop.f32.mrf.mxu0
      %v2259 = vpop.f32.mrf.mxu0
      %v2260 = vadd.f32 %v2093, %v2259
      %v2261 = vpop.f32.mrf.mxu0
      %2262 = vmatprep.mubr.bf16.mxu0 %v2053
      %2263 = vmatmul.mubr.bf16.gmra.mxu0 %v2052
      %v2264 = vpop.f32.mrf.mxu0
      %v2265 = vadd.f32 %v2093, %v2264
      %v2266 = vpop.f32.mrf.mxu0
      %v2267 = vpop.f32.mrf.mxu0
      %v2268 = vadd.f32 %v2093, %v2267
      %v2269 = vpop.f32.mrf.mxu0
      %2270 = vmatprep.mubr.bf16.mxu0 %v2055
      %2271 = vmatmul.mubr.bf16.gmra.mxu0 %v2054
      %v2272 = vpop.f32.mrf.mxu0
      %v2273 = vadd.f32 %v2093, %v2272
      %v2274 = vpop.f32.mrf.mxu0
      %v2275 = vpop.f32.mrf.mxu0
      %v2276 = vadd.f32 %v2093, %v2275
      %v2277 = vpop.f32.mrf.mxu0
      %2278 = vmatprep.mubr.bf16.mxu0 %v2057
      %2279 = vmatmul.mubr.bf16.gmra.mxu0 %v2056
      %v2280 = vpop.f32.mrf.mxu0
      %v2281 = vadd.f32 %v2093, %v2280
      %v2282 = vpop.f32.mrf.mxu0
      %v2283 = vpop.f32.mrf.mxu0
      %v2284 = vadd.f32 %v2093, %v2283
      %v2285 = vpop.f32.mrf.mxu0
      %2286 = vdwg.mxu0
      %vm2287 = vcmp.gt.f32.partialorder %v2225, 0.0
      %vm2288 = vcmp.gt.f32.partialorder %v2228, 0.0
      %vm2289 = vcmp.gt.f32.partialorder %v2233, 0.0
      %vm2290 = vcmp.gt.f32.partialorder %v2236, 0.0
      %vm2291 = vcmp.gt.f32.partialorder %v2241, 0.0
      %vm2292 = vcmp.gt.f32.partialorder %v2244, 0.0
      %vm2293 = vcmp.gt.f32.partialorder %v2249, 0.0
      %vm2294 = vcmp.gt.f32.partialorder %v2252, 0.0
      %vm2295 = vcmp.gt.f32.partialorder %v2257, 0.0
      %vm2296 = vcmp.gt.f32.partialorder %v2260, 0.0
      %vm2297 = vcmp.gt.f32.partialorder %v2265, 0.0
      %vm2298 = vcmp.gt.f32.partialorder %v2268, 0.0
      %vm2299 = vcmp.gt.f32.partialorder %v2273, 0.0
      %vm2300 = vcmp.gt.f32.partialorder %v2276, 0.0
      %vm2301 = vcmp.gt.f32.partialorder %v2281, 0.0
      %vm2302 = vcmp.gt.f32.partialorder %v2284, 0.0
      %v2303 = vmul.f32 %v2225, 1.442695
      %v2304 = vpow.pop %v2303
      %v2305 = vmul.f32 %v2228, 1.442695
      %v2306 = vpow.pop %v2305
      %v2307 = vmul.f32 %v2233, 1.442695
      %v2308 = vpow.pop %v2307
      %v2309 = vmul.f32 %v2236, 1.442695
      %v2310 = vpow.pop %v2309
      %v2311 = vmul.f32 %v2241, 1.442695
      %v2312 = vpow.pop %v2311
      %v2313 = vmul.f32 %v2244, 1.442695
      %v2314 = vpow.pop %v2313
      %v2315 = vmul.f32 %v2249, 1.442695
      %v2316 = vpow.pop %v2315
      %v2317 = vmul.f32 %v2252, 1.442695
      %v2318 = vpow.pop %v2317
      %v2319 = vmul.f32 %v2257, 1.442695
      %v2320 = vpow.pop %v2319
      %v2321 = vmul.f32 %v2260, 1.442695
      %v2322 = vpow.pop %v2321
      %v2323 = vmul.f32 %v2265, 1.442695
      %v2324 = vpow.pop %v2323
      %v2325 = vmul.f32 %v2268, 1.442695
      %v2326 = vpow.pop %v2325
      %v2327 = vmul.f32 %v2273, 1.442695
      %v2328 = vpow.pop %v2327
      %v2329 = vmul.f32 %v2276, 1.442695
      %v2330 = vpow.pop %v2329
      %v2331 = vmul.f32 %v2281, 1.442695
      %v2332 = vpow.pop %v2331
      %v2333 = vmul.f32 %v2284, 1.442695
      %v2334 = vpow.pop %v2333
      %v2335 = vsub.f32 %v2304, 1.0
      %v2336 = vsub.f32 %v2306, 1.0
      %v2337 = vsub.f32 %v2308, 1.0
      %v2338 = vsub.f32 %v2310, 1.0
      %v2339 = vsub.f32 %v2312, 1.0
      %v2340 = vsub.f32 %v2314, 1.0
      %v2341 = vsub.f32 %v2316, 1.0
      %v2342 = vsub.f32 %v2318, 1.0
      %v2343 = vsub.f32 %v2320, 1.0
      %v2344 = vsub.f32 %v2322, 1.0
      %v2345 = vsub.f32 %v2324, 1.0
      %v2346 = vsub.f32 %v2326, 1.0
      %v2347 = vsub.f32 %v2328, 1.0
      %v2348 = vsub.f32 %v2330, 1.0
      %v2349 = vsub.f32 %v2332, 1.0
      %v2350 = vsub.f32 %v2334, 1.0
      %v2351 = vsel %vm2287, %v2225, %v2335
      %v2352 = vsel %vm2288, %v2228, %v2336
      %v2353 = vsel %vm2289, %v2233, %v2337
      %v2354 = vsel %vm2290, %v2236, %v2338
      %v2355 = vsel %vm2291, %v2241, %v2339
      %v2356 = vsel %vm2292, %v2244, %v2340
      %v2357 = vsel %vm2293, %v2249, %v2341
      %v2358 = vsel %vm2294, %v2252, %v2342
      %v2359 = vsel %vm2295, %v2257, %v2343
      %v2360 = vsel %vm2296, %v2260, %v2344
      %v2361 = vsel %vm2297, %v2265, %v2345
      %v2362 = vsel %vm2298, %v2268, %v2346
      %v2363 = vsel %vm2299, %v2273, %v2347
      %v2364 = vsel %vm2300, %v2276, %v2348
      %v2365 = vsel %vm2301, %v2281, %v2349
      %v2366 = vsel %vm2302, %v2284, %v2350
      %v2367 = vpack.c.bf16 %v2352, %v2351
      %v2368 = vpack.c.bf16 %v2354, %v2353
      %v2369 = vpack.c.bf16 %v2356, %v2355
      %v2370 = vpack.c.bf16 %v2358, %v2357
      %v2371 = vpack.c.bf16 %v2360, %v2359
      %v2372 = vpack.c.bf16 %v2362, %v2361
      %v2373 = vpack.c.bf16 %v2364, %v2363
      %v2374 = vpack.c.bf16 %v2366, %v2365
      %v2375 = vld [vmem:[%s7] sm:$0xf]
      %v2376 = vld [vmem:[%s7 + $0x4] sm:$0xf]
      %v2377 = vld [vmem:[%s7 + $0x8] sm:$0xf]
      %v2378 = vld [vmem:[%s7 + $0xc] sm:$0xf]
      %v2379 = vld [vmem:[%s7 + $0x10] sm:$0xf]
      %v2380 = vld [vmem:[%s7 + $0x14] sm:$0xf]
      %v2381 = vld [vmem:[%s7 + $0x18] sm:$0xf]
      %v2382 = vld [vmem:[%s7 + $0x1c] sm:$0xf]
      %v2383 = vld [vmem:[%s7 + $0x20] sm:$0xf]
      %v2384 = vld [vmem:[%s7 + $0x24] sm:$0xf]
      %v2385 = vld [vmem:[%s7 + $0x28] sm:$0xf]
      %v2386 = vld [vmem:[%s7 + $0x2c] sm:$0xf]
      %v2387 = vld [vmem:[%s7 + $0x30] sm:$0xf]
      %v2388 = vld [vmem:[%s7 + $0x34] sm:$0xf]
      %v2389 = vld [vmem:[%s7 + $0x38] sm:$0xf]
      %v2390 = vld [vmem:[%s7 + $0x3c] sm:$0xf]
      %v2391 = vlaneseq
      %v2392 = vshrl.u32 %v2391, 7
      %v2393 = vsub.s32 6, %v2392
      %v2394 = vrot.slane %v380, %v2393
      %v2411 = vunpack.c.l.b16 %v2375
      %v2412 = vunpack.c.l.b16 %v2376
      %v2413 = vunpack.c.l.b16 %v2377
      %v2414 = vunpack.c.l.b16 %v2378
      %v2415 = vunpack.c.l.b16 %v2379
      %v2416 = vunpack.c.l.b16 %v2380
      %v2417 = vunpack.c.l.b16 %v2381
      %v2418 = vunpack.c.l.b16 %v2382
      %v2419 = vunpack.c.l.b16 %v2383
      %v2420 = vunpack.c.l.b16 %v2384
      %v2421 = vunpack.c.l.b16 %v2385
      %v2422 = vunpack.c.l.b16 %v2386
      %v2423 = vunpack.c.l.b16 %v2387
      %v2424 = vunpack.c.l.b16 %v2388
      %v2425 = vunpack.c.l.b16 %v2389
      %v2426 = vunpack.c.l.b16 %v2390
      %v2427 = vpack.c.b16 %v2412, %v2411
      %v2428 = vpack.c.b16 %v2414, %v2413
      %v2429 = vpack.c.b16 %v2416, %v2415
      %v2430 = vpack.c.b16 %v2418, %v2417
      %v2431 = vpack.c.b16 %v2420, %v2419
      %v2432 = vpack.c.b16 %v2422, %v2421
      %v2433 = vpack.c.b16 %v2424, %v2423
      %v2434 = vpack.c.b16 %v2426, %v2425
      %2443 = vmatprep.subr.bf16.mxu0 0
      %2444 = vmatpush1.bf16.msra.mxu0 %v2434
      %2445 = vmatprep.subr.bf16.mxu0 0
      %2446 = vmatpush1.bf16.msra.mxu0 %v2433
      %2447 = vmatprep.subr.bf16.mxu0 0
      %2448 = vmatpush1.bf16.msra.mxu0 %v2432
      %2449 = vmatprep.subr.bf16.mxu0 0
      %2450 = vmatpush1.bf16.msra.mxu0 %v2431
      %2451 = vmatprep.subr.bf16.mxu0 0
      %2452 = vmatpush1.bf16.msra.mxu0 %v2430
      %2453 = vmatprep.subr.bf16.mxu0 0
      %2454 = vmatpush1.bf16.msra.mxu0 %v2429
      %2455 = vmatprep.subr.bf16.mxu0 0
      %2456 = vmatpush1.bf16.msra.mxu0 %v2428
      %2457 = vmatprep.subr.bf16.mxu0 0
      %2458 = vmatpush1.bf16.msra.mxu0 %v2427
      %2459 = vmatprep.subr.bf16.mxu0 0
      %2460 = vmatpush2.bf16.msra.mxu0 0
      %2461 = vmatprep.subr.bf16.mxu0 0
      %2462 = vmatpush2.bf16.msra.mxu0 0
      %2463 = vmatprep.subr.bf16.mxu0 0
      %2464 = vmatpush2.bf16.msra.mxu0 0
      %2465 = vmatprep.subr.bf16.mxu0 0
      %2466 = vmatpush2.bf16.msra.mxu0 0
      %2467 = vmatprep.subr.bf16.mxu0 0
      %2468 = vmatpush2.bf16.msra.mxu0 0
      %2469 = vmatprep.subr.bf16.mxu0 0
      %2470 = vmatpush2.bf16.msra.mxu0 0
      %2471 = vmatprep.subr.bf16.mxu0 0
      %2472 = vmatpush2.bf16.msra.mxu0 0
      %2473 = vmatprep.subr.bf16.mxu0 0
      %2474 = vmatpush2.bf16.msra.mxu0 0
      %2475 = vmatprep.mubr.bf16.mxu0 0
      %2476 = vmatmul.mubr.bf16.gmra.mxu0 %v2367
      %v2477 = vpop.f32.mrf.mxu0
      %v2478 = vadd.f32 %v2394, %v2477
      %v2479 = vpop.f32.mrf.mxu0
      %v2480 = vpop.f32.mrf.mxu0
      %v2481 = vadd.f32 %v2394, %v2480
      %v2482 = vpop.f32.mrf.mxu0
      %2483 = vmatprep.mubr.bf16.mxu0 0
      %2484 = vmatmul.mubr.bf16.gmra.mxu0 %v2368
      %v2485 = vpop.f32.mrf.mxu0
      %v2486 = vadd.f32 %v2394, %v2485
      %v2487 = vpop.f32.mrf.mxu0
      %v2488 = vpop.f32.mrf.mxu0
      %v2489 = vadd.f32 %v2394, %v2488
      %v2490 = vpop.f32.mrf.mxu0
      %2491 = vmatprep.mubr.bf16.mxu0 0
      %2492 = vmatmul.mubr.bf16.gmra.mxu0 %v2369
      %v2493 = vpop.f32.mrf.mxu0
      %v2494 = vadd.f32 %v2394, %v2493
      %v2495 = vpop.f32.mrf.mxu0
      %v2496 = vpop.f32.mrf.mxu0
      %v2497 = vadd.f32 %v2394, %v2496
      %v2498 = vpop.f32.mrf.mxu0
      %2499 = vmatprep.mubr.bf16.mxu0 0
      %2500 = vmatmul.mubr.bf16.gmra.mxu0 %v2370
      %v2501 = vpop.f32.mrf.mxu0
      %v2502 = vadd.f32 %v2394, %v2501
      %v2503 = vpop.f32.mrf.mxu0
      %v2504 = vpop.f32.mrf.mxu0
      %v2505 = vadd.f32 %v2394, %v2504
      %v2506 = vpop.f32.mrf.mxu0
      %2507 = vmatprep.mubr.bf16.mxu0 0
      %2508 = vmatmul.mubr.bf16.gmra.mxu0 %v2371
      %v2509 = vpop.f32.mrf.mxu0
      %v2510 = vadd.f32 %v2394, %v2509
      %v2511 = vpop.f32.mrf.mxu0
      %v2512 = vpop.f32.mrf.mxu0
      %v2513 = vadd.f32 %v2394, %v2512
      %v2514 = vpop.f32.mrf.mxu0
      %2515 = vmatprep.mubr.bf16.mxu0 0
      %2516 = vmatmul.mubr.bf16.gmra.mxu0 %v2372
      %v2517 = vpop.f32.mrf.mxu0
      %v2518 = vadd.f32 %v2394, %v2517
      %v2519 = vpop.f32.mrf.mxu0
      %v2520 = vpop.f32.mrf.mxu0
      %v2521 = vadd.f32 %v2394, %v2520
      %v2522 = vpop.f32.mrf.mxu0
      %2523 = vmatprep.mubr.bf16.mxu0 0
      %2524 = vmatmul.mubr.bf16.gmra.mxu0 %v2373
      %v2525 = vpop.f32.mrf.mxu0
      %v2526 = vadd.f32 %v2394, %v2525
      %v2527 = vpop.f32.mrf.mxu0
      %v2528 = vpop.f32.mrf.mxu0
      %v2529 = vadd.f32 %v2394, %v2528
      %v2530 = vpop.f32.mrf.mxu0
      %2531 = vmatprep.mubr.bf16.mxu0 0
      %2532 = vmatmul.mubr.bf16.gmra.mxu0 %v2374
      %v2533 = vpop.f32.mrf.mxu0
      %v2534 = vadd.f32 %v2394, %v2533
      %v2535 = vpop.f32.mrf.mxu0
      %v2536 = vpop.f32.mrf.mxu0
      %v2537 = vadd.f32 %v2394, %v2536
      %v2538 = vpop.f32.mrf.mxu0
      %2539 = vdwg.mxu0
      %2540 = vst [vmem:[%s377] sm:$0xff] %v2478
      %2541 = vst [vmem:[%s377 + $0x8] sm:$0xff] %v2481
      %2542 = vst [vmem:[%s377 + $0x10] sm:$0xff] %v2486
      %2543 = vst [vmem:[%s377 + $0x18] sm:$0xff] %v2489
      %2544 = vst [vmem:[%s377 + $0x20] sm:$0xff] %v2494
      %2545 = vst [vmem:[%s377 + $0x28] sm:$0xff] %v2497
      %2546 = vst [vmem:[%s377 + $0x30] sm:$0xff] %v2502
      %2547 = vst [vmem:[%s377 + $0x38] sm:$0xff] %v2505
      %2548 = vst [vmem:[%s377 + $0x40] sm:$0xff] %v2510
      %2549 = vst [vmem:[%s377 + $0x48] sm:$0xff] %v2513
      %2550 = vst [vmem:[%s377 + $0x50] sm:$0xff] %v2518
      %2551 = vst [vmem:[%s377 + $0x58] sm:$0xff] %v2521
      %2552 = vst [vmem:[%s377 + $0x60] sm:$0xff] %v2526
      %2553 = vst [vmem:[%s377 + $0x68] sm:$0xff] %v2529
      %2554 = vst [vmem:[%s377 + $0x70] sm:$0xff] %v2534
      %2555 = vst [vmem:[%s377 + $0x78] sm:$0xff] %v2537
      %s2556 = smul.u32 16, %s22
      %p2557 = scmp.lt.s32.totalorder %s2556, 31
      %s2558 = scalar_select %p2557, %s2556, 31
      %s2559 = smul.addr %s2558, 2
      %s2560 = smul.addr %s2559, 8
      %s2561 = scalar_lea.vmem %s9, %s2560
      %s2562 = smul.u32 16, %s22
      %p2563 = scmp.lt.s32.totalorder %s2562, 31
      %s2564 = scalar_select %p2563, %s2562, 31
      %s2565 = smul.addr %s2564, 8
      %s2566 = scalar_lea.vmem %s10, %s2565
      // Predicated region
      $region57: #{rpn_forward.1} parent=55 // pred_check
        %p2567 = pneg %p234
      $region58: #{rpn_forward.1} parent=55 // pred_check_branch
        %2569 = sbr.rel (%p2567) target = $region60
      $region59: #{rpn_forward.1} parent=55 // pred_region
        %s2570 = smul.u32 16, %s22
      $region60: #{rpn_forward.1} parent=55 // pred_fallthru
        _
      // Predicated region
      $region61: #{rpn_forward.1} parent=55 // pred_check
        %p2571 = pneg %p260
      $region62: #{rpn_forward.1} parent=55 // pred_check_branch
        %2573 = sbr.rel (%p2571) target = $region64
      $region63: #{rpn_forward.1} parent=55 // pred_region
        %s2574 = smul.u32 16, %s22
      $region64: #{rpn_forward.1} parent=55 // pred_fallthru
        _
    $region56: #{rpn_forward.1} parent=5 // pred_fallthru
      _
    %p2575 = scmp.le.s32.totalorder 2, %s17
    // Predicated region
    $region65: #{rpn_forward.1} parent=5 // pred_check
      %p2576 = pneg %p2575
    $region66: #{rpn_forward.1} parent=5 // pred_check_branch
      %2578 = sbr.rel (%p2576) target = $region68
    $region67: #{rpn_forward.1} parent=5 // pred_region
      %s2579 = ssub.s32 %s17, 2
      // Predicated region
      $region69: #{rpn_forward.1} parent=67 // pred_check
        %p2580 = pneg %p240
      $region70: #{rpn_forward.1} parent=67 // pred_check_branch
        %2582 = sbr.rel (%p2580) target = $region72
      $region71: #{rpn_forward.1} parent=67 // pred_region
        %s2583 = smul.u32 16, %s23
        %p2584 = scmp.lt.s32.totalorder %s2583, 31
        %s2585 = scalar_select %p2584, %s2583, 31
        %s2586 = smul.addr %s2585, 2
        %s2587 = smul.addr %s2586, 8
        %s2588 = scalar_lea.vmem %s9, %s2587
      $region72: #{rpn_forward.1} parent=67 // pred_fallthru
        _
      // Predicated region
      $region73: #{rpn_forward.1} parent=67 // pred_check
        %p2589 = pneg %p266
      $region74: #{rpn_forward.1} parent=67 // pred_check_branch
        %2591 = sbr.rel (%p2589) target = $region76
      $region75: #{rpn_forward.1} parent=67 // pred_region
        %s2592 = smul.u32 16, %s23
        %p2593 = scmp.lt.s32.totalorder %s2592, 31
        %s2594 = scalar_select %p2593, %s2592, 31
        %s2595 = smul.addr %s2594, 8
        %s2596 = scalar_lea.vmem %s10, %s2595
      $region76: #{rpn_forward.1} parent=67 // pred_fallthru
        _
    $region68: #{rpn_forward.1} parent=5 // pred_fallthru
      _
  $region6: #{rpn_forward.1} parent=0 // loop_footer
    %s21 = sadd.s32 1, %s17
  $region7: #{rpn_forward.1} parent=0 // loop_footer_branch
    %16 = sbr.rel target = $region3
  $region8: #{rpn_forward.1} parent=0 // loop_exit
    _

</llo_original>
